<compile_context>
chip_gen: v6e
topology: v6e:2x2x1
jax: 0.10.0
libtpu: 0.0.40
codegen_flags: <defaults>
</compile_context>

<pallas_src>
import functools

import jax
import jax.numpy as jnp
from jax.experimental import pallas as pl
from jax.experimental.pallas import tpu as pltpu

D_IN = 358    # embedding_size / ANN input features
H1 = 512
H2 = 256
D_EMB = 128   # internal_embedding_size
D_PROJ = 128


def _image_embedding_kernel(
    x_ref,
    w1_ref, b1_ref,
    w2_ref, b2_ref,
    w3_ref, b3_ref,
    wp1_ref, bp1_ref,
    wp2_ref, bp2_ref,
    emb_ref, proj_ref,
):
    """One batch tile: 5 MXU matmuls (bf16 operands, f32 accumulation); bias+ReLU in f32."""
    f32 = jnp.float32
    bf16 = jnp.bfloat16

    # Raw f32 x tile straight from HBM (no wrapper convert/pad); cast to bf16 on the VPU.
    # The K=358 contraction is handled by Mosaic's masked matmul (no padding needed).
    x = x_ref[...].astype(bf16)                                         # (bb, 358) bf16

    # ANN backbone (embedding network)
    h1 = jnp.dot(x, w1_ref[...], preferred_element_type=f32) + b1_ref[...]
    h1 = jnp.maximum(h1, 0.0).astype(bf16)

    h2 = jnp.dot(h1, w2_ref[...], preferred_element_type=f32) + b2_ref[...]
    h2 = jnp.maximum(h2, 0.0).astype(bf16)

    emb = jnp.dot(h2, w3_ref[...], preferred_element_type=f32) + b3_ref[...]
    emb_ref[...] = emb                                                  # f32 output

    # Projection head: Linear -> ReLU -> Linear
    p1 = jnp.dot(emb.astype(bf16), wp1_ref[...], preferred_element_type=f32) + bp1_ref[...]
    p1 = jnp.maximum(p1, 0.0).astype(bf16)

    proj = jnp.dot(p1, wp2_ref[...], preferred_element_type=f32) + bp2_ref[...]
    proj_ref[...] = proj                                                # f32 output


def _round_up(n, m):
    return ((n + m - 1) // m) * m


def _resident_spec(shape):
    """BlockSpec for a weight/bias that is identical at every grid step.

    Single-buffer it (pl.Buffered(1)) so the grid-invariant operand is not pointlessly
    double-buffered in VMEM; fall back to default pipelining if pipeline_mode is not
    accepted by this BlockSpec signature.
    """
    index_map = lambda i: (0, 0)
    try:
        return pl.BlockSpec(shape, index_map, pipeline_mode=pl.Buffered(buffer_count=1))
    except (TypeError, AttributeError):
        return pl.BlockSpec(shape, index_map)


def prepare_params(params):
    """One-time conversion of f32 params into kernel-ready dtypes.

    Weights (keys starting with 'w', (in, out) layout) -> bf16; biases ((1, out)) stay f32.
    Call once and reuse across forwards so no conversion HLOs sit on the per-call path.
    """
    return {
        k: (v.astype(jnp.bfloat16) if k.startswith("w") else v.astype(jnp.float32))
        for k, v in params.items()
    }


@functools.partial(jax.jit, static_argnames=("block_b",))
def image_embedding_forward(x, params, block_b=512):
    """Fused ImageEmbedding forward.

    x: (B, 358) float32
    params: dict from prepare_params (bf16 (in,out) weights, f32 (1,out) biases);
            raw f32 params also work (identity converts are elided when already bf16).
    block_b: max batch tile (MXU M dim), multiple of 8; automatically clamped so the
             parallel grid has >= 2 steps (keeps both v7x TensorCores busy).
    returns (embedding (B, 128), projection (B, 128)), float32.
    """
    B = x.shape[0]
    assert x.shape[1] == D_IN, f"expected {D_IN} input features, got {x.shape[1]}"
    assert block_b % 8 == 0, "block_b must be a multiple of 8 (prefer 128/256/512/1024)"

    # v7x shards the "parallel" grid axis over its 2 TensorCores: clamp the tile so the
    # grid has >= 2 steps whenever B allows it. Harmless on single-TC v5e/v6e.
    bb = min(block_b, max(128, _round_up(pl.cdiv(B, 2), 128)))
    grid = (pl.cdiv(B, bb),)   # ragged last tile: OOB input rows are garbage but isolated
                               # per-row, and Pallas masks the OOB output writes.

    bf16 = jnp.bfloat16
    # No-op converts when params come from prepare_params (XLA drops identity converts);
    # keeps the kernel correct if raw f32 params are passed instead.
    w1 = params["w1"].astype(bf16)
    w2 = params["w2"].astype(bf16)
    w3 = params["w3"].astype(bf16)
    wp1 = params["wp1"].astype(bf16)
    wp2 = params["wp2"].astype(bf16)
    b1, b2, b3 = params["b1"], params["b2"], params["b3"]      # biases stay f32
    bp1, bp2 = params["bp1"], params["bp2"]

    def batch_tile(i):
        return (i, 0)

    weight_specs = [
        _resident_spec((D_IN, H1)), _resident_spec((1, H1)),
        _resident_spec((H1, H2)), _resident_spec((1, H2)),
        _resident_spec((H2, D_EMB)), _resident_spec((1, D_EMB)),
        _resident_spec((D_EMB, D_PROJ)), _resident_spec((1, D_PROJ)),
        _resident_spec((D_PROJ, D_PROJ)), _resident_spec((1, D_PROJ)),
    ]

    grid_spec = pltpu.PrefetchScalarGridSpec(
        num_scalar_prefetch=0,
        grid=grid,
        # x block: last dim 358 equals the full array extent (exempt from the 128-lane
        # divisibility rule), so the f32 input is DMA'd as-is with no wrapper copy.
        in_specs=[pl.BlockSpec((bb, D_IN), batch_tile)] + weight_specs,
        out_specs=[
            pl.BlockSpec((bb, D_EMB), batch_tile),
            pl.BlockSpec((bb, D_PROJ), batch_tile),
        ],
        scratch_shapes=[],
    )

    # Advisory cost estimate so XLA's scheduler overlaps neighboring ops with this
    # (mostly memory-bound) kernel.
    b_eff = grid[0] * bb
    mac = D_IN * H1 + H1 * H2 + H2 * D_EMB + D_EMB * D_PROJ + D_PROJ * D_PROJ
    flops = 2 * b_eff * mac
    weight_bytes = 2 * mac + 4 * (H1 + H2 + D_EMB + D_PROJ + D_PROJ)
    bytes_accessed = 4 * B * D_IN + 4 * B * (D_EMB + D_PROJ) + weight_bytes

    emb, proj = pl.pallas_call(
        _image_embedding_kernel,
        grid_spec=grid_spec,
        out_shape=(
            jax.ShapeDtypeStruct((B, D_EMB), jnp.float32),
            jax.ShapeDtypeStruct((B, D_PROJ), jnp.float32),
        ),
        compiler_params=pltpu.CompilerParams(
            dimension_semantics=("parallel",),
            # Explicit budget so large block_b still fits v7x's smaller VMEM; worst case
            # (block_b=1024) is well under this on all generations.
            vmem_limit_bytes=32 * 1024 * 1024,
        ),
        cost_estimate=pl.CostEstimate(
            flops=flops, transcendentals=0, bytes_accessed=bytes_accessed),
    )(
        x,
        w1, b1,
        w2, b2,
        w3, b3,
        wp1, bp1,
        wp2, bp2,
    )
    return emb, proj


def init_params(key):
    """Deterministic synthetic params. Weights stored as (in, out); biases as (1, out)."""
    ks = jax.random.split(key, 10)

    def linear(kw, kb, fan_in, fan_out):
        # uniform(-1/sqrt(fan_in), 1/sqrt(fan_in)), like PyTorch's default Linear init
        bound = 1.0 / (fan_in ** 0.5)
        w = jax.random.uniform(kw, (fan_in, fan_out), jnp.float32, -bound, bound)
        b = jax.random.uniform(kb, (1, fan_out), jnp.float32, -bound, bound)
        return w, b

    w1, b1 = linear(ks[0], ks[1], D_IN, H1)
    w2, b2 = linear(ks[2], ks[3], H1, H2)
    w3, b3 = linear(ks[4], ks[5], H2, D_EMB)
    wp1, bp1 = linear(ks[6], ks[7], D_EMB, D_PROJ)
    wp2, bp2 = linear(ks[8], ks[9], D_PROJ, D_PROJ)
    return {
        "w1": w1, "b1": b1,
        "w2": w2, "b2": b2,
        "w3": w3, "b3": b3,
        "wp1": wp1, "bp1": bp1,
        "wp2": wp2, "bp2": bp2,
    }


def reference_forward(x, p):
    """Pure-f32 JAX reference (PyTorch-equivalent math)."""
    h = jnp.maximum(x @ p["w1"] + p["b1"], 0.0)
    h = jnp.maximum(h @ p["w2"] + p["b2"], 0.0)
    emb = h @ p["w3"] + p["b3"]
    pr = jnp.maximum(emb @ p["wp1"] + p["bp1"], 0.0)
    proj = pr @ p["wp2"] + p["bp2"]
    return emb, proj


def reference_forward_mixed(x, p):
    """Reference mirroring the kernel's mixed precision: bf16 matmul operands, f32 accumulate."""
    bf16, f32 = jnp.bfloat16, jnp.float32

    def lin(h_bf16, w, b):
        return jnp.dot(h_bf16, w.astype(bf16), preferred_element_type=f32) + b

    h = jnp.maximum(lin(x.astype(bf16), p["w1"], p["b1"]), 0.0).astype(bf16)
    h = jnp.maximum(lin(h, p["w2"], p["b2"]), 0.0).astype(bf16)
    emb = lin(h, p["w3"], p["b3"])
    pr = jnp.maximum(lin(emb.astype(bf16), p["wp1"], p["bp1"]), 0.0).astype(bf16)
    proj = lin(pr, p["wp2"], p["bp2"])
    return emb, proj


if __name__ == "__main__":
    key = jax.random.PRNGKey(0)
    kx, kp = jax.random.split(key)

    B = 193  # the spec's batch_size; deliberately NOT a tile multiple (exercises ragged edge)
    x = jax.random.normal(kx, (B, D_IN), dtype=jnp.float32)
    params = init_params(kp)
    kernel_params = prepare_params(params)   # one-time bf16 weight conversion (off hot path)

    emb, proj = image_embedding_forward(x, kernel_params, block_b=512)
    emb, proj = jax.block_until_ready((emb, proj))

    assert emb.shape == (B, D_EMB) and proj.shape == (B, D_PROJ)
    assert emb.dtype == jnp.float32 and proj.dtype == jnp.float32

    # Tight check against a reference that mirrors the kernel's bf16/f32 mixed precision.
    emb_m, proj_m = reference_forward_mixed(x, params)
    assert jnp.allclose(emb, emb_m, atol=2e-3, rtol=2e-3)
    assert jnp.allclose(proj, proj_m, atol=2e-3, rtol=2e-3)

    # Looser check against the pure-f32 PyTorch-equivalent reference (bf16 MXU numerics).
    emb_f, proj_f = reference_forward(x, params)
    assert jnp.allclose(emb, emb_f, atol=5e-2, rtol=5e-2)
    assert jnp.allclose(proj, proj_f, atol=5e-2, rtol=5e-2)

    print("KERNEL_OK")
</pallas_src>

<mosaic_0001>
module attributes {stable_mosaic.version = 11 : i64} {
  func.func @_image_embedding_kernel(%arg0: i32, %arg1: memref<128x358xf32, #tpu.memory_space<vmem>>, %arg2: memref<358x512xbf16, #tpu.memory_space<vmem>>, %arg3: memref<1x512xf32, #tpu.memory_space<vmem>>, %arg4: memref<512x256xbf16, #tpu.memory_space<vmem>>, %arg5: memref<1x256xf32, #tpu.memory_space<vmem>>, %arg6: memref<256x128xbf16, #tpu.memory_space<vmem>>, %arg7: memref<1x128xf32, #tpu.memory_space<vmem>>, %arg8: memref<128x128xbf16, #tpu.memory_space<vmem>>, %arg9: memref<1x128xf32, #tpu.memory_space<vmem>>, %arg10: memref<128x128xbf16, #tpu.memory_space<vmem>>, %arg11: memref<1x128xf32, #tpu.memory_space<vmem>>, %arg12: memref<128x128xf32, #tpu.memory_space<vmem>>, %arg13: memref<128x128xf32, #tpu.memory_space<vmem>>) attributes {dimension_semantics = [#tpu.dimension_semantics<parallel>], iteration_bounds = array<i64: 2>, scalar_prefetch = 0 : i64, scratch_operands = 0 : i64, tpu.core_type = #tpu.core_type<tc>, window_params = [{transform_indices = @transform_0, window_bounds = array<i64: 128, 358>}, {pipeline_mode = #tpu.pipeline_mode<synchronous>, transform_indices = @transform_1, window_bounds = array<i64: 358, 512>}, {pipeline_mode = #tpu.pipeline_mode<synchronous>, transform_indices = @transform_2, window_bounds = array<i64: 1, 512>}, {pipeline_mode = #tpu.pipeline_mode<synchronous>, transform_indices = @transform_3, window_bounds = array<i64: 512, 256>}, {pipeline_mode = #tpu.pipeline_mode<synchronous>, transform_indices = @transform_4, window_bounds = array<i64: 1, 256>}, {pipeline_mode = #tpu.pipeline_mode<synchronous>, transform_indices = @transform_5, window_bounds = array<i64: 256, 128>}, {pipeline_mode = #tpu.pipeline_mode<synchronous>, transform_indices = @transform_6, window_bounds = array<i64: 1, 128>}, {pipeline_mode = #tpu.pipeline_mode<synchronous>, transform_indices = @transform_7, window_bounds = array<i64: 128, 128>}, {pipeline_mode = #tpu.pipeline_mode<synchronous>, transform_indices = @transform_8, window_bounds = array<i64: 1, 128>}, {pipeline_mode = #tpu.pipeline_mode<synchronous>, transform_indices = @transform_9, window_bounds = array<i64: 128, 128>}, {pipeline_mode = #tpu.pipeline_mode<synchronous>, transform_indices = @transform_10, window_bounds = array<i64: 1, 128>}, {transform_indices = @transform_11, window_bounds = array<i64: 128, 128>}, {transform_indices = @transform_12, window_bounds = array<i64: 128, 128>}]} {
    %c0 = arith.constant 0 : index
    %c0_0 = arith.constant 0 : index
    %0 = vector.load %arg1[%c0, %c0_0] : memref<128x358xf32, #tpu.memory_space<vmem>>, vector<128x358xf32>
    %1 = arith.truncf %0 : vector<128x358xf32> to vector<128x358xbf16>
    %c0_1 = arith.constant 0 : index
    %c0_2 = arith.constant 0 : index
    %2 = vector.load %arg2[%c0_1, %c0_2] : memref<358x512xbf16, #tpu.memory_space<vmem>>, vector<358x512xbf16>
    %cst = arith.constant dense<0.000000e+00> : vector<128x512xf32>
    %3 = tpu.matmul %1, %2, %cst {dimension_numbers = #tpu.dot_dimension_numbers<[1], [0], [0], [1], [0, 0, 1, 1], [], []>} : vector<128x358xbf16>, vector<358x512xbf16>, vector<128x512xf32> -> vector<128x512xf32>
    %c0_3 = arith.constant 0 : index
    %c0_4 = arith.constant 0 : index
    %4 = vector.load %arg3[%c0_3, %c0_4] : memref<1x512xf32, #tpu.memory_space<vmem>>, vector<1x512xf32>
    %5 = vector.broadcast %4 : vector<1x512xf32> to vector<128x512xf32>
    %6 = arith.addf %3, %5 : vector<128x512xf32>
    %cst_5 = arith.constant 0.000000e+00 : f32
    %7 = vector.broadcast %cst_5 : f32 to vector<128x512xf32>
    %8 = arith.maximumf %6, %7 : vector<128x512xf32>
    %9 = arith.truncf %8 : vector<128x512xf32> to vector<128x512xbf16>
    %c0_6 = arith.constant 0 : index
    %c0_7 = arith.constant 0 : index
    %10 = vector.load %arg4[%c0_6, %c0_7] : memref<512x256xbf16, #tpu.memory_space<vmem>>, vector<512x256xbf16>
    %cst_8 = arith.constant dense<0.000000e+00> : vector<128x256xf32>
    %11 = tpu.matmul %9, %10, %cst_8 {dimension_numbers = #tpu.dot_dimension_numbers<[1], [0], [0], [1], [0, 0, 1, 1], [], []>} : vector<128x512xbf16>, vector<512x256xbf16>, vector<128x256xf32> -> vector<128x256xf32>
    %c0_9 = arith.constant 0 : index
    %c0_10 = arith.constant 0 : index
    %12 = vector.load %arg5[%c0_9, %c0_10] : memref<1x256xf32, #tpu.memory_space<vmem>>, vector<1x256xf32>
    %13 = vector.broadcast %12 : vector<1x256xf32> to vector<128x256xf32>
    %14 = arith.addf %11, %13 : vector<128x256xf32>
    %cst_11 = arith.constant 0.000000e+00 : f32
    %15 = vector.broadcast %cst_11 : f32 to vector<128x256xf32>
    %16 = arith.maximumf %14, %15 : vector<128x256xf32>
    %17 = arith.truncf %16 : vector<128x256xf32> to vector<128x256xbf16>
    %c0_12 = arith.constant 0 : index
    %c0_13 = arith.constant 0 : index
    %18 = vector.load %arg6[%c0_12, %c0_13] : memref<256x128xbf16, #tpu.memory_space<vmem>>, vector<256x128xbf16>
    %cst_14 = arith.constant dense<0.000000e+00> : vector<128x128xf32>
    %19 = tpu.matmul %17, %18, %cst_14 {dimension_numbers = #tpu.dot_dimension_numbers<[1], [0], [0], [1], [0, 0, 1, 1], [], []>} : vector<128x256xbf16>, vector<256x128xbf16>, vector<128x128xf32> -> vector<128x128xf32>
    %c0_15 = arith.constant 0 : index
    %c0_16 = arith.constant 0 : index
    %20 = vector.load %arg7[%c0_15, %c0_16] : memref<1x128xf32, #tpu.memory_space<vmem>>, vector<1x128xf32>
    %21 = vector.broadcast %20 : vector<1x128xf32> to vector<128x128xf32>
    %22 = arith.addf %19, %21 : vector<128x128xf32>
    %c0_17 = arith.constant 0 : index
    %c0_18 = arith.constant 0 : index
    %23 = vector.load %arg12[%c0_17, %c0_18] : memref<128x128xf32, #tpu.memory_space<vmem>>, vector<128x128xf32>
    tpu.vector_store %arg12[%c0_17, %c0_18], %22 {strides = array<i32>} : memref<128x128xf32, #tpu.memory_space<vmem>>, vector<128x128xf32>,
    %24 = arith.truncf %22 : vector<128x128xf32> to vector<128x128xbf16>
    %c0_19 = arith.constant 0 : index
    %c0_20 = arith.constant 0 : index
    %25 = vector.load %arg8[%c0_19, %c0_20] : memref<128x128xbf16, #tpu.memory_space<vmem>>, vector<128x128xbf16>
    %cst_21 = arith.constant dense<0.000000e+00> : vector<128x128xf32>
    %26 = tpu.matmul %24, %25, %cst_21 {dimension_numbers = #tpu.dot_dimension_numbers<[1], [0], [0], [1], [0, 0, 1, 1], [], []>} : vector<128x128xbf16>, vector<128x128xbf16>, vector<128x128xf32> -> vector<128x128xf32>
    %c0_22 = arith.constant 0 : index
    %c0_23 = arith.constant 0 : index
    %27 = vector.load %arg9[%c0_22, %c0_23] : memref<1x128xf32, #tpu.memory_space<vmem>>, vector<1x128xf32>
    %28 = vector.broadcast %27 : vector<1x128xf32> to vector<128x128xf32>
    %29 = arith.addf %26, %28 : vector<128x128xf32>
    %cst_24 = arith.constant 0.000000e+00 : f32
    %30 = vector.broadcast %cst_24 : f32 to vector<128x128xf32>
    %31 = arith.maximumf %29, %30 : vector<128x128xf32>
    %32 = arith.truncf %31 : vector<128x128xf32> to vector<128x128xbf16>
    %c0_25 = arith.constant 0 : index
    %c0_26 = arith.constant 0 : index
    %33 = vector.load %arg10[%c0_25, %c0_26] : memref<128x128xbf16, #tpu.memory_space<vmem>>, vector<128x128xbf16>
    %cst_27 = arith.constant dense<0.000000e+00> : vector<128x128xf32>
    %34 = tpu.matmul %32, %33, %cst_27 {dimension_numbers = #tpu.dot_dimension_numbers<[1], [0], [0], [1], [0, 0, 1, 1], [], []>} : vector<128x128xbf16>, vector<128x128xbf16>, vector<128x128xf32> -> vector<128x128xf32>
    %c0_28 = arith.constant 0 : index
    %c0_29 = arith.constant 0 : index
    %35 = vector.load %arg11[%c0_28, %c0_29] : memref<1x128xf32, #tpu.memory_space<vmem>>, vector<1x128xf32>
    %36 = vector.broadcast %35 : vector<1x128xf32> to vector<128x128xf32>
    %37 = arith.addf %34, %36 : vector<128x128xf32>
    %c0_30 = arith.constant 0 : index
    %c0_31 = arith.constant 0 : index
    %38 = vector.load %arg13[%c0_30, %c0_31] : memref<128x128xf32, #tpu.memory_space<vmem>>, vector<128x128xf32>
    tpu.vector_store %arg13[%c0_30, %c0_31], %37 {strides = array<i32>} : memref<128x128xf32, #tpu.memory_space<vmem>>, vector<128x128xf32>,
    return
  }
  func.func @transform_0(%arg0: i32) -> (i32, i32) {
    %c0_i32 = arith.constant 0 : i32
    %c0_i32_0 = arith.constant 0 : i32
    return %arg0, %c0_i32 : i32, i32
  }
  func.func @transform_1(%arg0: i32) -> (i32, i32) {
    %c0_i32 = arith.constant 0 : i32
    %c0_i32_0 = arith.constant 0 : i32
    %c0_i32_1 = arith.constant 0 : i32
    return %c0_i32, %c0_i32_0 : i32, i32
  }
  func.func @transform_2(%arg0: i32) -> (i32, i32) {
    %c0_i32 = arith.constant 0 : i32
    %c0_i32_0 = arith.constant 0 : i32
    %c0_i32_1 = arith.constant 0 : i32
    return %c0_i32, %c0_i32_0 : i32, i32
  }
  func.func @transform_3(%arg0: i32) -> (i32, i32) {
    %c0_i32 = arith.constant 0 : i32
    %c0_i32_0 = arith.constant 0 : i32
    %c0_i32_1 = arith.constant 0 : i32
    return %c0_i32, %c0_i32_0 : i32, i32
  }
  func.func @transform_4(%arg0: i32) -> (i32, i32) {
    %c0_i32 = arith.constant 0 : i32
    %c0_i32_0 = arith.constant 0 : i32
    %c0_i32_1 = arith.constant 0 : i32
    return %c0_i32, %c0_i32_0 : i32, i32
  }
  func.func @transform_5(%arg0: i32) -> (i32, i32) {
    %c0_i32 = arith.constant 0 : i32
    %c0_i32_0 = arith.constant 0 : i32
    %c0_i32_1 = arith.constant 0 : i32
    return %c0_i32, %c0_i32_0 : i32, i32
  }
  func.func @transform_6(%arg0: i32) -> (i32, i32) {
    %c0_i32 = arith.constant 0 : i32
    %c0_i32_0 = arith.constant 0 : i32
    %c0_i32_1 = arith.constant 0 : i32
    return %c0_i32, %c0_i32_0 : i32, i32
  }
  func.func @transform_7(%arg0: i32) -> (i32, i32) {
    %c0_i32 = arith.constant 0 : i32
    %c0_i32_0 = arith.constant 0 : i32
    %c0_i32_1 = arith.constant 0 : i32
    return %c0_i32, %c0_i32_0 : i32, i32
  }
  func.func @transform_8(%arg0: i32) -> (i32, i32) {
    %c0_i32 = arith.constant 0 : i32
    %c0_i32_0 = arith.constant 0 : i32
    %c0_i32_1 = arith.constant 0 : i32
    return %c0_i32, %c0_i32_0 : i32, i32
  }
  func.func @transform_9(%arg0: i32) -> (i32, i32) {
    %c0_i32 = arith.constant 0 : i32
    %c0_i32_0 = arith.constant 0 : i32
    %c0_i32_1 = arith.constant 0 : i32
    return %c0_i32, %c0_i32_0 : i32, i32
  }
  func.func @transform_10(%arg0: i32) -> (i32, i32) {
    %c0_i32 = arith.constant 0 : i32
    %c0_i32_0 = arith.constant 0 : i32
    %c0_i32_1 = arith.constant 0 : i32
    return %c0_i32, %c0_i32_0 : i32, i32
  }
  func.func @transform_11(%arg0: i32) -> (i32, i32) {
    %c0_i32 = arith.constant 0 : i32
    %c0_i32_0 = arith.constant 0 : i32
    return %arg0, %c0_i32 : i32, i32
  }
  func.func @transform_12(%arg0: i32) -> (i32, i32) {
    %c0_i32 = arith.constant 0 : i32
    %c0_i32_0 = arith.constant 0 : i32
    return %arg0, %c0_i32 : i32, i32
  }
}

</mosaic_0001>

<llo_original>
// kernel: image_embedding_forward.1
$region0: #{image_embedding_forward.1}
  #allocation0 [shape = 'u32[]', space=smem, size = 0x4, offset = 0x4, fixed_abs, tag = 'smem constant byte address 0x4 - core index']
  #allocation1 [shape = 'u32[144,128]{1,0:T(1,128)}', space=vmem, size = 0x12000, scoped, tag = 'internal scratch']
  %s0 = inlined_call_operand.hbm [shape: f32[193,358], index: 0, kind: input, shape index: {}]
  %s1 = inlined_call_operand.hbm [shape: bf16[358,512], index: 1, kind: input, shape index: {}]
  %s2 = inlined_call_operand.hbm [shape: f32[1,512], index: 2, kind: input, shape index: {}]
  %s3 = inlined_call_operand.hbm [shape: bf16[512,256], index: 3, kind: input, shape index: {}]
  %s4 = inlined_call_operand.vmem [shape: f32[1,256], index: 4, kind: input, shape index: {}]
  %s5 = inlined_call_operand.hbm [shape: bf16[256,128], index: 5, kind: input, shape index: {}]
  %s6 = inlined_call_operand.vmem [shape: f32[1,128], index: 6, kind: input, shape index: {}]
  %s7 = inlined_call_operand.hbm [shape: bf16[128,128], index: 7, kind: input, shape index: {}]
  %s8 = inlined_call_operand.vmem [shape: f32[1,128], index: 8, kind: input, shape index: {}]
  %s9 = inlined_call_operand.hbm [shape: bf16[128,128], index: 9, kind: input, shape index: {}]
  %s10 = inlined_call_operand.vmem [shape: f32[1,128], index: 10, kind: input, shape index: {}]
  %s11 = inlined_call_operand.hbm [shape: f32[193,128], index: 11, kind: output, shape index: {0}]
  %s12 = inlined_call_operand.hbm [shape: f32[193,128], index: 12, kind: output, shape index: {1}]
  %13 = xla_tuple %s11, %s12
  %s14 = sld [smem:[#allocation0]]
  $region113: #{image_embedding_forward.1} parent=0
    _
  %s16 = ssub.s32 1, %s14
  %s17 = scalar_select 0, %s16, %s14
  $region1: #{image_embedding_forward.1} parent=0
    #allocation2 [shape = 'u8[393216]{0}', space=vmem, size = 0x60000, scoped, tag = 'input window, operand 0']
    #allocation3 [shape = 's32[2]{0}', space=sflag, size = 0x8, scoped, tag = 'scoped memory for image_embedding_forward.1']
    #allocation4 [shape = 's32[2]{0}', space=sflag, size = 0x8, scoped, tag = 'scoped memory for image_embedding_forward.1']
    #allocation5 [shape = 'u8[368640]{0}', space=vmem, size = 0x5a000, scoped, tag = 'input window, operand 1, single buffered']
    #allocation6 [shape = 's32[1]{0}', space=sflag, size = 0x4, scoped, tag = 'scoped memory for image_embedding_forward.1']
    #allocation7 [shape = 'u8[2048]{0}', space=vmem, size = 0x800, scoped, tag = 'input window, operand 2, single buffered']
    #allocation8 [shape = 'u8[262144]{0}', space=vmem, size = 0x40000, scoped, tag = 'input window, operand 3, single buffered']
    #allocation9 [shape = 's32[1]{0}', space=sflag, size = 0x4, scoped, tag = 'scoped memory for image_embedding_forward.1']
    #allocation10 [shape = 'u8[65536]{0}', space=vmem, size = 0x10000, scoped, tag = 'input window, operand 5, single buffered']
    #allocation11 [shape = 'u8[32768]{0}', space=vmem, size = 0x8000, scoped, tag = 'input window, operand 7, single buffered']
    #allocation12 [shape = 's32[1]{0}', space=sflag, size = 0x4, scoped, tag = 'scoped memory for image_embedding_forward.1']
    #allocation13 [shape = 'u8[32768]{0}', space=vmem, size = 0x8000, scoped, tag = 'input window, operand 9, single buffered']
    #allocation14 [shape = 'u8[131072]{0}', space=vmem, size = 0x20000, scoped, tag = 'output window, operand 0']
    #allocation15 [shape = 'u8[131072]{0}', space=vmem, size = 0x20000, scoped, tag = 'output window, operand 1']
    #allocation16 [shape = 's32[2]{0}', space=sflag, size = 0x8, scoped, tag = 'scoped memory for image_embedding_forward.1']
    %18 = vsyncpa [#allocation3], 0
    %s19 = scalar_lea.sflag [#allocation3], 1
    %20 = vsyncpa %s19, 0
    %21 = vsyncpa [#allocation6], 0
    %22 = vsyncpa [#allocation9], 0
    %23 = vsyncpa [#allocation12], 0
    %24 = vsyncpa [#allocation4], 0
    %s25 = scalar_lea.sflag [#allocation4], 1
    %26 = vsyncpa %s25, 0
    %27 = vsyncpa [#allocation16], 0
    %s28 = scalar_lea.sflag [#allocation16], 1
    %29 = vsyncpa %s28, 0
    loop: start=0, step=1, limit=4
    $region2: #{image_embedding_forward.1} parent=1 // loop_pre_header
      _
    $region3: #{image_embedding_forward.1} parent=1 // loop_header
      %s31 = sphi 0, %s35
      %p32 = scmp.ge.s32.totalorder %s31, 4
      %s41 = sphi 0, %s43
      %s44 = sphi 0, %s41
      %s45 = sphi 0, %s44
      %s61 = sphi 0, %s45
      %s65 = sphi 0, %s65
      %s67 = sphi 0, %s65
      %s68 = sphi 0, %s67
      %s82 = sphi 0, %s68
      %s86 = sphi 0, %s86
      %s88 = sphi 0, %s86
      %s89 = sphi 0, %s88
      %s103 = sphi 0, %s89
      %s107 = sphi 0, %s107
      %s109 = sphi 0, %s107
      %s110 = sphi 0, %s109
      %s124 = sphi 0, %s110
      %s128 = sphi 0, %s128
      %s130 = sphi 0, %s128
      %s131 = sphi 0, %s130
      %s145 = sphi 0, %s131
      %s149 = sphi 0, %s149
      %s151 = sphi 0, %s149
      %s152 = sphi 0, %s151
      %s166 = sphi 0, %s152
      %s170 = sphi 0, %s170
      %s172 = sphi 0, %s170
      %s173 = sphi 0, %s172
      %s187 = sphi 0, %s173
      %s191 = sphi 0, %s191
      %s193 = sphi 0, %s191
      %s194 = sphi 0, %s193
      %s208 = sphi 0, %s194
      %s212 = sphi 0, %s212
      %s214 = sphi 0, %s212
      %s215 = sphi 0, %s214
      %s229 = sphi 0, %s215
      %s233 = sphi 0, %s233
      %s235 = sphi 0, %s233
      %s236 = sphi 0, %s235
      %s250 = sphi 0, %s236
      %s254 = sphi 0, %s254
      %s256 = sphi 0, %s254
      %s257 = sphi 0, %s256
      %s271 = sphi 0, %s257
      %s277 = sphi 0, %s279
      %s280 = sphi 0, %s277
      %s281 = sphi 0, %s280
      %s297 = sphi 0, %s281
      %s303 = sphi 0, %s305
      %s306 = sphi 0, %s303
      %s307 = sphi 0, %s306
      %s323 = sphi 0, %s307
    $region4: #{image_embedding_forward.1} parent=1 // loop_header_branch
      %34 = sbr.rel (%p32) target = $region8
    $region5: #{image_embedding_forward.1} parent=1 // loop_body
      %s36 = ssub.s32 %s31, 1
      %s37 = ssub.s32 %s31, 2
      %s38 = sadd.s32 %s31, 1
      %s39 = ssub.s32 %s31, %s38
      %p40 = scmp.eq.s32.totalorder %s39, 0
      %s42 = sadd.s32 %s41, 1
      %s43 = scalar_select %p40, %s41, %s42
      %p46 = pneg %p40
      %p47 = scmp.eq.s32.totalorder %s31, 1
      %p48 = por %p46, %p47
      %p49 = scmp.ne.s32.totalorder %s41, %s44
      %p50 = scmp.eq.s32.totalorder %s31, 0
      %p51 = por %p49, %p50
      %p52 = scmp.ne.s32.totalorder %s41, %s44
      %p53 = scmp.eq.s32.totalorder %s36, 1
      %p54 = por %p52, %p53
      %p55 = scmp.ne.s32.totalorder %s44, %s45
      %p56 = scmp.eq.s32.totalorder %s36, 0
      %p57 = por %p55, %p56
      %p58 = scmp.ne.s32.totalorder %s44, %s45
      %p59 = scmp.eq.s32.totalorder %s37, 1
      %p60 = por %p58, %p59
      %p62 = scmp.ne.s32.totalorder %s45, %s61
      %p63 = scmp.eq.s32.totalorder %s37, 0
      %p64 = por %p62, %p63
      %s66 = sadd.s32 %s65, 1
      %p69 = scmp.eq.s32.totalorder %s31, 1
      %p70 = scmp.ne.s32.totalorder %s65, %s67
      %p71 = scmp.eq.s32.totalorder %s31, 0
      %p72 = por %p70, %p71
      %p73 = scmp.ne.s32.totalorder %s65, %s67
      %p74 = scmp.eq.s32.totalorder %s36, 1
      %p75 = por %p73, %p74
      %p76 = scmp.ne.s32.totalorder %s67, %s68
      %p77 = scmp.eq.s32.totalorder %s36, 0
      %p78 = por %p76, %p77
      %p79 = scmp.ne.s32.totalorder %s67, %s68
      %p80 = scmp.eq.s32.totalorder %s37, 1
      %p81 = por %p79, %p80
      %p83 = scmp.ne.s32.totalorder %s68, %s82
      %p84 = scmp.eq.s32.totalorder %s37, 0
      %p85 = por %p83, %p84
      %s87 = sadd.s32 %s86, 1
      %p90 = scmp.eq.s32.totalorder %s31, 1
      %p91 = scmp.ne.s32.totalorder %s86, %s88
      %p92 = scmp.eq.s32.totalorder %s31, 0
      %p93 = por %p91, %p92
      %p94 = scmp.ne.s32.totalorder %s86, %s88
      %p95 = scmp.eq.s32.totalorder %s36, 1
      %p96 = por %p94, %p95
      %p97 = scmp.ne.s32.totalorder %s88, %s89
      %p98 = scmp.eq.s32.totalorder %s36, 0
      %p99 = por %p97, %p98
      %p100 = scmp.ne.s32.totalorder %s88, %s89
      %p101 = scmp.eq.s32.totalorder %s37, 1
      %p102 = por %p100, %p101
      %p104 = scmp.ne.s32.totalorder %s89, %s103
      %p105 = scmp.eq.s32.totalorder %s37, 0
      %p106 = por %p104, %p105
      %s108 = sadd.s32 %s107, 1
      %p111 = scmp.eq.s32.totalorder %s31, 1
      %p112 = scmp.ne.s32.totalorder %s107, %s109
      %p113 = scmp.eq.s32.totalorder %s31, 0
      %p114 = por %p112, %p113
      %p115 = scmp.ne.s32.totalorder %s107, %s109
      %p116 = scmp.eq.s32.totalorder %s36, 1
      %p117 = por %p115, %p116
      %p118 = scmp.ne.s32.totalorder %s109, %s110
      %p119 = scmp.eq.s32.totalorder %s36, 0
      %p120 = por %p118, %p119
      %p121 = scmp.ne.s32.totalorder %s109, %s110
      %p122 = scmp.eq.s32.totalorder %s37, 1
      %p123 = por %p121, %p122
      %p125 = scmp.ne.s32.totalorder %s110, %s124
      %p126 = scmp.eq.s32.totalorder %s37, 0
      %p127 = por %p125, %p126
      %s129 = sadd.s32 %s128, 1
      %p132 = scmp.eq.s32.totalorder %s31, 1
      %p133 = scmp.ne.s32.totalorder %s128, %s130
      %p134 = scmp.eq.s32.totalorder %s31, 0
      %p135 = por %p133, %p134
      %p136 = scmp.ne.s32.totalorder %s128, %s130
      %p137 = scmp.eq.s32.totalorder %s36, 1
      %p138 = por %p136, %p137
      %p139 = scmp.ne.s32.totalorder %s130, %s131
      %p140 = scmp.eq.s32.totalorder %s36, 0
      %p141 = por %p139, %p140
      %p142 = scmp.ne.s32.totalorder %s130, %s131
      %p143 = scmp.eq.s32.totalorder %s37, 1
      %p144 = por %p142, %p143
      %p146 = scmp.ne.s32.totalorder %s131, %s145
      %p147 = scmp.eq.s32.totalorder %s37, 0
      %p148 = por %p146, %p147
      %s150 = sadd.s32 %s149, 1
      %p153 = scmp.eq.s32.totalorder %s31, 1
      %p154 = scmp.ne.s32.totalorder %s149, %s151
      %p155 = scmp.eq.s32.totalorder %s31, 0
      %p156 = por %p154, %p155
      %p157 = scmp.ne.s32.totalorder %s149, %s151
      %p158 = scmp.eq.s32.totalorder %s36, 1
      %p159 = por %p157, %p158
      %p160 = scmp.ne.s32.totalorder %s151, %s152
      %p161 = scmp.eq.s32.totalorder %s36, 0
      %p162 = por %p160, %p161
      %p163 = scmp.ne.s32.totalorder %s151, %s152
      %p164 = scmp.eq.s32.totalorder %s37, 1
      %p165 = por %p163, %p164
      %p167 = scmp.ne.s32.totalorder %s152, %s166
      %p168 = scmp.eq.s32.totalorder %s37, 0
      %p169 = por %p167, %p168
      %s171 = sadd.s32 %s170, 1
      %p174 = scmp.eq.s32.totalorder %s31, 1
      %p175 = scmp.ne.s32.totalorder %s170, %s172
      %p176 = scmp.eq.s32.totalorder %s31, 0
      %p177 = por %p175, %p176
      %p178 = scmp.ne.s32.totalorder %s170, %s172
      %p179 = scmp.eq.s32.totalorder %s36, 1
      %p180 = por %p178, %p179
      %p181 = scmp.ne.s32.totalorder %s172, %s173
      %p182 = scmp.eq.s32.totalorder %s36, 0
      %p183 = por %p181, %p182
      %p184 = scmp.ne.s32.totalorder %s172, %s173
      %p185 = scmp.eq.s32.totalorder %s37, 1
      %p186 = por %p184, %p185
      %p188 = scmp.ne.s32.totalorder %s173, %s187
      %p189 = scmp.eq.s32.totalorder %s37, 0
      %p190 = por %p188, %p189
      %s192 = sadd.s32 %s191, 1
      %p195 = scmp.eq.s32.totalorder %s31, 1
      %p196 = scmp.ne.s32.totalorder %s191, %s193
      %p197 = scmp.eq.s32.totalorder %s31, 0
      %p198 = por %p196, %p197
      %p199 = scmp.ne.s32.totalorder %s191, %s193
      %p200 = scmp.eq.s32.totalorder %s36, 1
      %p201 = por %p199, %p200
      %p202 = scmp.ne.s32.totalorder %s193, %s194
      %p203 = scmp.eq.s32.totalorder %s36, 0
      %p204 = por %p202, %p203
      %p205 = scmp.ne.s32.totalorder %s193, %s194
      %p206 = scmp.eq.s32.totalorder %s37, 1
      %p207 = por %p205, %p206
      %p209 = scmp.ne.s32.totalorder %s194, %s208
      %p210 = scmp.eq.s32.totalorder %s37, 0
      %p211 = por %p209, %p210
      %s213 = sadd.s32 %s212, 1
      %p216 = scmp.eq.s32.totalorder %s31, 1
      %p217 = scmp.ne.s32.totalorder %s212, %s214
      %p218 = scmp.eq.s32.totalorder %s31, 0
      %p219 = por %p217, %p218
      %p220 = scmp.ne.s32.totalorder %s212, %s214
      %p221 = scmp.eq.s32.totalorder %s36, 1
      %p222 = por %p220, %p221
      %p223 = scmp.ne.s32.totalorder %s214, %s215
      %p224 = scmp.eq.s32.totalorder %s36, 0
      %p225 = por %p223, %p224
      %p226 = scmp.ne.s32.totalorder %s214, %s215
      %p227 = scmp.eq.s32.totalorder %s37, 1
      %p228 = por %p226, %p227
      %p230 = scmp.ne.s32.totalorder %s215, %s229
      %p231 = scmp.eq.s32.totalorder %s37, 0
      %p232 = por %p230, %p231
      %s234 = sadd.s32 %s233, 1
      %p237 = scmp.eq.s32.totalorder %s31, 1
      %p238 = scmp.ne.s32.totalorder %s233, %s235
      %p239 = scmp.eq.s32.totalorder %s31, 0
      %p240 = por %p238, %p239
      %p241 = scmp.ne.s32.totalorder %s233, %s235
      %p242 = scmp.eq.s32.totalorder %s36, 1
      %p243 = por %p241, %p242
      %p244 = scmp.ne.s32.totalorder %s235, %s236
      %p245 = scmp.eq.s32.totalorder %s36, 0
      %p246 = por %p244, %p245
      %p247 = scmp.ne.s32.totalorder %s235, %s236
      %p248 = scmp.eq.s32.totalorder %s37, 1
      %p249 = por %p247, %p248
      %p251 = scmp.ne.s32.totalorder %s236, %s250
      %p252 = scmp.eq.s32.totalorder %s37, 0
      %p253 = por %p251, %p252
      %s255 = sadd.s32 %s254, 1
      %p258 = scmp.eq.s32.totalorder %s31, 1
      %p259 = scmp.ne.s32.totalorder %s254, %s256
      %p260 = scmp.eq.s32.totalorder %s31, 0
      %p261 = por %p259, %p260
      %p262 = scmp.ne.s32.totalorder %s254, %s256
      %p263 = scmp.eq.s32.totalorder %s36, 1
      %p264 = por %p262, %p263
      %p265 = scmp.ne.s32.totalorder %s256, %s257
      %p266 = scmp.eq.s32.totalorder %s36, 0
      %p267 = por %p265, %p266
      %p268 = scmp.ne.s32.totalorder %s256, %s257
      %p269 = scmp.eq.s32.totalorder %s37, 1
      %p270 = por %p268, %p269
      %p272 = scmp.ne.s32.totalorder %s257, %s271
      %p273 = scmp.eq.s32.totalorder %s37, 0
      %p274 = por %p272, %p273
      %s275 = ssub.s32 %s31, %s38
      %p276 = scmp.eq.s32.totalorder %s275, 0
      %s278 = sadd.s32 %s277, 1
      %s279 = scalar_select %p276, %s277, %s278
      %p282 = pneg %p276
      %p283 = scmp.eq.s32.totalorder %s31, 1
      %p284 = por %p282, %p283
      %p285 = scmp.ne.s32.totalorder %s277, %s280
      %p286 = scmp.eq.s32.totalorder %s31, 0
      %p287 = por %p285, %p286
      %p288 = scmp.ne.s32.totalorder %s277, %s280
      %p289 = scmp.eq.s32.totalorder %s36, 1
      %p290 = por %p288, %p289
      %p291 = scmp.ne.s32.totalorder %s280, %s281
      %p292 = scmp.eq.s32.totalorder %s36, 0
      %p293 = por %p291, %p292
      %p294 = scmp.ne.s32.totalorder %s280, %s281
      %p295 = scmp.eq.s32.totalorder %s37, 1
      %p296 = por %p294, %p295
      %p298 = scmp.ne.s32.totalorder %s281, %s297
      %p299 = scmp.eq.s32.totalorder %s37, 0
      %p300 = por %p298, %p299
      %s301 = ssub.s32 %s31, %s38
      %p302 = scmp.eq.s32.totalorder %s301, 0
      %s304 = sadd.s32 %s303, 1
      %s305 = scalar_select %p302, %s303, %s304
      %p308 = pneg %p302
      %p309 = scmp.eq.s32.totalorder %s31, 1
      %p310 = por %p308, %p309
      %p311 = scmp.ne.s32.totalorder %s303, %s306
      %p312 = scmp.eq.s32.totalorder %s31, 0
      %p313 = por %p311, %p312
      %p314 = scmp.ne.s32.totalorder %s303, %s306
      %p315 = scmp.eq.s32.totalorder %s36, 1
      %p316 = por %p314, %p315
      %p317 = scmp.ne.s32.totalorder %s306, %s307
      %p318 = scmp.eq.s32.totalorder %s36, 0
      %p319 = por %p317, %p318
      %p320 = scmp.ne.s32.totalorder %s306, %s307
      %p321 = scmp.eq.s32.totalorder %s37, 1
      %p322 = por %p320, %p321
      %p324 = scmp.ne.s32.totalorder %s307, %s323
      %p325 = scmp.eq.s32.totalorder %s37, 0
      %p326 = por %p324, %p325
      %p327 = scmp.le.s32.totalorder 1, %s31
      %p328 = scmp.lt.s32.totalorder %s31, 3
      %p329 = pnand %p327, %p328
      %p330 = pneg %p329
      // Predicated region
      $region9: #{image_embedding_forward.1} parent=5 // pred_check
        _
      $region10: #{image_embedding_forward.1} parent=5 // pred_check_branch
        %332 = sbr.rel (%p329) target = $region12
      $region11: #{image_embedding_forward.1} parent=5 // pred_region
        %s333 = ssub.s32 %s31, 1
        // Predicated region
        $region13: #{image_embedding_forward.1} parent=11 // pred_check
          %p334 = pneg %p78
        $region14: #{image_embedding_forward.1} parent=11 // pred_check_branch
          %336 = sbr.rel (%p334) target = $region16
        $region15: #{image_embedding_forward.1} parent=11 // pred_region
          %s338 = ssub.s32 11520, 11520
          %339 = vsyncadd [#allocation6], %s338
          %s340 = sshll.u32 [#allocation5], 4
          %s341 = int_to_ptr.vmem [resolvable:$true] %s340
          %346 = dma.hbm_to_vmem [thread:$0]  %s1, 11520, %s341, [#allocation6], 256, 256, 16
        $region16: #{image_embedding_forward.1} parent=11 // pred_fallthru
          _
        // Predicated region
        $region17: #{image_embedding_forward.1} parent=11 // pred_check
          %p347 = pneg %p99
        $region18: #{image_embedding_forward.1} parent=11 // pred_check_branch
          %349 = sbr.rel (%p347) target = $region20
        $region19: #{image_embedding_forward.1} parent=11 // pred_region
          %s351 = ssub.s32 64, 64
          %352 = vsyncadd [#allocation6], %s351
          %s354 = sshll.u32 [#allocation7], 4
          %s355 = int_to_ptr.vmem [resolvable:$true] %s354
          %357 = dma.hbm_to_vmem [thread:$0]  %s2, 64, %s355, [#allocation6]
        $region20: #{image_embedding_forward.1} parent=11 // pred_fallthru
          _
        // Predicated region
        $region21: #{image_embedding_forward.1} parent=11 // pred_check
          %p358 = pneg %p120
        $region22: #{image_embedding_forward.1} parent=11 // pred_check_branch
          %360 = sbr.rel (%p358) target = $region24
        $region23: #{image_embedding_forward.1} parent=11 // pred_region
          %s362 = ssub.s32 8192, 8192
          %363 = vsyncadd [#allocation9], %s362
          %s364 = sshll.u32 [#allocation8], 4
          %s365 = int_to_ptr.vmem [resolvable:$true] %s364
          %370 = dma.hbm_to_vmem [thread:$0]  %s3, 8192, %s365, [#allocation9], 128, 128, 8
        $region24: #{image_embedding_forward.1} parent=11 // pred_fallthru
          _
        // Predicated region
        $region25: #{image_embedding_forward.1} parent=11 // pred_check
          %p371 = pneg %p141
        $region26: #{image_embedding_forward.1} parent=11 // pred_check_branch
          %373 = sbr.rel (%p371) target = $region28
        $region27: #{image_embedding_forward.1} parent=11 // pred_region
          _
        $region28: #{image_embedding_forward.1} parent=11 // pred_fallthru
          _
        // Predicated region
        $region29: #{image_embedding_forward.1} parent=11 // pred_check
          %p374 = pneg %p162
        $region30: #{image_embedding_forward.1} parent=11 // pred_check_branch
          %376 = sbr.rel (%p374) target = $region32
        $region31: #{image_embedding_forward.1} parent=11 // pred_region
          %s378 = ssub.s32 2048, 2048
          %379 = vsyncadd [#allocation9], %s378
          %s380 = sshll.u32 [#allocation10], 4
          %s381 = int_to_ptr.vmem [resolvable:$true] %s380
          %386 = dma.hbm_to_vmem [thread:$0]  %s5, 2048, %s381, [#allocation9], 64, 64, 4
        $region32: #{image_embedding_forward.1} parent=11 // pred_fallthru
          _
        // Predicated region
        $region33: #{image_embedding_forward.1} parent=11 // pred_check
          %p387 = pneg %p183
        $region34: #{image_embedding_forward.1} parent=11 // pred_check_branch
          %389 = sbr.rel (%p387) target = $region36
        $region35: #{image_embedding_forward.1} parent=11 // pred_region
          _
        $region36: #{image_embedding_forward.1} parent=11 // pred_fallthru
          _
        // Predicated region
        $region37: #{image_embedding_forward.1} parent=11 // pred_check
          %p390 = pneg %p204
        $region38: #{image_embedding_forward.1} parent=11 // pred_check_branch
          %392 = sbr.rel (%p390) target = $region40
        $region39: #{image_embedding_forward.1} parent=11 // pred_region
          %s394 = ssub.s32 1024, 1024
          %395 = vsyncadd [#allocation12], %s394
          %s396 = sshll.u32 [#allocation11], 4
          %s397 = int_to_ptr.vmem [resolvable:$true] %s396
          %402 = dma.hbm_to_vmem [thread:$0]  %s7, 1024, %s397, [#allocation12], 64, 64, 4
        $region40: #{image_embedding_forward.1} parent=11 // pred_fallthru
          _
        // Predicated region
        $region41: #{image_embedding_forward.1} parent=11 // pred_check
          %p403 = pneg %p225
        $region42: #{image_embedding_forward.1} parent=11 // pred_check_branch
          %405 = sbr.rel (%p403) target = $region44
        $region43: #{image_embedding_forward.1} parent=11 // pred_region
          _
        $region44: #{image_embedding_forward.1} parent=11 // pred_fallthru
          _
        // Predicated region
        $region45: #{image_embedding_forward.1} parent=11 // pred_check
          %p406 = pneg %p246
        $region46: #{image_embedding_forward.1} parent=11 // pred_check_branch
          %408 = sbr.rel (%p406) target = $region48
        $region47: #{image_embedding_forward.1} parent=11 // pred_region
          %s410 = ssub.s32 1024, 1024
          %411 = vsyncadd [#allocation12], %s410
          %s412 = sshll.u32 [#allocation13], 4
          %s413 = int_to_ptr.vmem [resolvable:$true] %s412
          %418 = dma.hbm_to_vmem [thread:$0]  %s9, 1024, %s413, [#allocation12], 64, 64, 4
        $region48: #{image_embedding_forward.1} parent=11 // pred_fallthru
          _
        // Predicated region
        $region49: #{image_embedding_forward.1} parent=11 // pred_check
          %p419 = pneg %p267
        $region50: #{image_embedding_forward.1} parent=11 // pred_check_branch
          %421 = sbr.rel (%p419) target = $region52
        $region51: #{image_embedding_forward.1} parent=11 // pred_region
          _
        $region52: #{image_embedding_forward.1} parent=11 // pred_fallthru
          _
      $region12: #{image_embedding_forward.1} parent=5 // pred_fallthru
        _
      %p422 = scmp.lt.s32.totalorder %s31, 2
      // Predicated region
      $region53: #{image_embedding_forward.1} parent=5 // pred_check
        %p423 = pneg %p422
      $region54: #{image_embedding_forward.1} parent=5 // pred_check_branch
        %425 = sbr.rel (%p423) target = $region56
      $region55: #{image_embedding_forward.1} parent=5 // pred_region
        // Predicated region
        $region57: #{image_embedding_forward.1} parent=55 // pred_check
          %p426 = pneg %p51
        $region58: #{image_embedding_forward.1} parent=55 // pred_check_branch
          %428 = sbr.rel (%p426) target = $region60
        $region59: #{image_embedding_forward.1} parent=55 // pred_region
          %s429 = sand.u32 %s41, 1
          %s430 = scalar_lea.sflag [#allocation3], %s429
          %s431 = sand.u32 %s41, 1
          %s432 = smul.addr %s431, 384
          %s433 = scalar_lea.vmem [#allocation2], %s432
          %s434 = smul.u32 16, %s31
          %s435 = ssub.s32 25, %s434
          %p436 = scmp.lt.s32.totalorder %s435, 16
          %s437 = scalar_select %p436, %s435, 16
          %s438 = smul.u32 128, %s437
          %s439 = smul.u32 %s438, 3
          %s441 = ssub.s32 6144, %s439
          %442 = vsyncadd %s430, %s441
          %p443 = scmp.ne.s32.totalorder 0, %s439
          %s444 = smul.addr %s434, 3
          %s445 = smul.addr %s444, 128
          %s446 = scalar_lea.hbm %s0, %s445
          %s447 = smul.u32 24, %s437
          %s448 = sshll.u32 %s433, 4
          %s449 = int_to_ptr.vmem [resolvable:$true] %s448
          %s450 = sshll.u32 %s447, 4
          %454 = dma.hbm_to_vmem [thread:$0]  (%p443), %s446, %s450, %s449, %s430, 384, 384, 24
        $region60: #{image_embedding_forward.1} parent=55 // pred_fallthru
          _
      $region56: #{image_embedding_forward.1} parent=5 // pred_fallthru
        _
      %p455 = scmp.le.s32.totalorder 1, %s31
      %p456 = scmp.lt.s32.totalorder %s31, 3
      %p457 = pnand %p455, %p456
      %p458 = pneg %p457
      // Predicated region
      $region61: #{image_embedding_forward.1} parent=5 // pred_check
        _
      $region62: #{image_embedding_forward.1} parent=5 // pred_check_branch
        %460 = sbr.rel (%p457) target = $region64
      $region63: #{image_embedding_forward.1} parent=5 // pred_region
        %s461 = ssub.s32 %s31, 1
        %s462 = sand.u32 %s44, 1
        %s463 = scalar_lea.sflag [#allocation3], %s462
        %s464 = sand.u32 %s44, 1
        %s465 = smul.addr %s464, 384
        %s466 = scalar_lea.vmem [#allocation2], %s465
        // Predicated region
        $region65: #{image_embedding_forward.1} parent=63 // pred_check
          %p467 = pneg %p57
        $region66: #{image_embedding_forward.1} parent=63 // pred_check_branch
          %469 = sbr.rel (%p467) target = $region68
        $region67: #{image_embedding_forward.1} parent=63 // pred_region
          %470 = dma.done %s463, 6144
        $region68: #{image_embedding_forward.1} parent=63 // pred_fallthru
          _
        // Predicated region
        $region69: #{image_embedding_forward.1} parent=63 // pred_check
          %p471 = pneg %p78
        $region70: #{image_embedding_forward.1} parent=63 // pred_check_branch
          %473 = sbr.rel (%p471) target = $region72
        $region71: #{image_embedding_forward.1} parent=63 // pred_region
          %474 = dma.done [#allocation6], 11520
        $region72: #{image_embedding_forward.1} parent=63 // pred_fallthru
          _
        // Predicated region
        $region73: #{image_embedding_forward.1} parent=63 // pred_check
          %p475 = pneg %p99
        $region74: #{image_embedding_forward.1} parent=63 // pred_check_branch
          %477 = sbr.rel (%p475) target = $region76
        $region75: #{image_embedding_forward.1} parent=63 // pred_region
          %478 = dma.done [#allocation6], 64
        $region76: #{image_embedding_forward.1} parent=63 // pred_fallthru
          _
        // Predicated region
        $region77: #{image_embedding_forward.1} parent=63 // pred_check
          %p479 = pneg %p120
        $region78: #{image_embedding_forward.1} parent=63 // pred_check_branch
          %481 = sbr.rel (%p479) target = $region80
        $region79: #{image_embedding_forward.1} parent=63 // pred_region
          %482 = dma.done [#allocation9], 8192
        $region80: #{image_embedding_forward.1} parent=63 // pred_fallthru
          _
        // Predicated region
        $region81: #{image_embedding_forward.1} parent=63 // pred_check
          %p483 = pneg %p162
        $region82: #{image_embedding_forward.1} parent=63 // pred_check_branch
          %485 = sbr.rel (%p483) target = $region84
        $region83: #{image_embedding_forward.1} parent=63 // pred_region
          %486 = dma.done [#allocation9], 2048
        $region84: #{image_embedding_forward.1} parent=63 // pred_fallthru
          _
        // Predicated region
        $region85: #{image_embedding_forward.1} parent=63 // pred_check
          %p487 = pneg %p204
        $region86: #{image_embedding_forward.1} parent=63 // pred_check_branch
          %489 = sbr.rel (%p487) target = $region88
        $region87: #{image_embedding_forward.1} parent=63 // pred_region
          %490 = dma.done [#allocation12], 1024
        $region88: #{image_embedding_forward.1} parent=63 // pred_fallthru
          _
        // Predicated region
        $region89: #{image_embedding_forward.1} parent=63 // pred_check
          %p491 = pneg %p246
        $region90: #{image_embedding_forward.1} parent=63 // pred_check_branch
          %493 = sbr.rel (%p491) target = $region92
        $region91: #{image_embedding_forward.1} parent=63 // pred_region
          %494 = dma.done [#allocation12], 1024
        $region92: #{image_embedding_forward.1} parent=63 // pred_fallthru
          _
        %s495 = sand.u32 %s44, 1
        %s496 = scalar_lea.sflag [#allocation3], %s495
        %s497 = sand.u32 %s44, 1
        %s498 = smul.addr %s497, 384
        %s499 = scalar_lea.vmem [#allocation2], %s498
        %p500 = pneg %p57
        %p501 = pneg %p54
        %p502 = pneg %p78
        %p503 = pneg %p75
        %p504 = pneg %p99
        %p505 = pneg %p96
        %p506 = pneg %p120
        %p507 = pneg %p117
        %p508 = pneg %p141
        %p509 = pneg %p138
        %p510 = pneg %p162
        %p511 = pneg %p159
        %p512 = pneg %p183
        %p513 = pneg %p180
        %p514 = pneg %p204
        %p515 = pneg %p201
        %p516 = pneg %p225
        %p517 = pneg %p222
        %p518 = pneg %p246
        %p519 = pneg %p243
        %p520 = pneg %p267
        %p521 = pneg %p264
        %p522 = pneg %p293
        %p523 = pneg %p290
        %s524 = sand.u32 %s280, 1
        %s525 = scalar_lea.sflag [#allocation4], %s524
        %s526 = sand.u32 %s280, 1
        %s527 = smul.addr %s526, 128
        %s528 = scalar_lea.vmem [#allocation14], %s527
        %p529 = pneg %p319
        %p530 = pneg %p316
        %s531 = sand.u32 %s306, 1
        %s532 = scalar_lea.sflag [#allocation16], %s531
        %s533 = sand.u32 %s306, 1
        %s534 = smul.addr %s533, 128
        %s535 = scalar_lea.vmem [#allocation15], %s534
        %s536 = smul.u32 16, %s36
        %s537 = ssub.s32 25, %s536
        %p538 = scmp.lt.s32.totalorder %s537, 16
        %s539 = scalar_select %p538, %s537, 16
        %s540 = smul.u32 128, %s539
        %s541 = smul.u32 %s540, 3
        %s542 = smul.u32 16, %s36
        %s543 = ssub.s32 25, %s542
        %p544 = scmp.lt.s32.totalorder %s543, 16
        %s545 = scalar_select %p544, %s543, 16
        %s546 = smul.u32 128, %s545
        %s547 = smul.u32 16, %s36
        %s548 = ssub.s32 25, %s547
        %p549 = scmp.lt.s32.totalorder %s548, 16
        %s550 = scalar_select %p549, %s548, 16
        %s551 = smul.u32 128, %s550
        %v553 = vld [vmem:[%s466] sm:$0xff]
        %v554 = vld [vmem:[%s466 + $0x8] sm:$0xff]
        %v555 = vld [vmem:[%s466 + $0x10] sm:$0xff]
        %v556 = vld [vmem:[%s466 + $0x18] sm:$0xff]
        %v557 = vld [vmem:[%s466 + $0x20] sm:$0xff]
        %v558 = vld [vmem:[%s466 + $0x28] sm:$0xff]
        %v559 = vld [vmem:[%s466 + $0x30] sm:$0xff]
        %v560 = vld [vmem:[%s466 + $0x38] sm:$0xff]
        %v561 = vld [vmem:[%s466 + $0x40] sm:$0xff]
        %v562 = vld [vmem:[%s466 + $0x48] sm:$0xff]
        %v563 = vld [vmem:[%s466 + $0x50] sm:$0xff]
        %v564 = vld [vmem:[%s466 + $0x58] sm:$0xff]
        %v565 = vld [vmem:[%s466 + $0x60] sm:$0xff]
        %v566 = vld [vmem:[%s466 + $0x68] sm:$0xff]
        %v567 = vld [vmem:[%s466 + $0x70] sm:$0xff]
        %v568 = vld [vmem:[%s466 + $0x78] sm:$0xff]
        %v569 = vld [vmem:[%s466 + $0x80] sm:$0xff]
        %v570 = vld [vmem:[%s466 + $0x88] sm:$0xff]
        %v571 = vld [vmem:[%s466 + $0x90] sm:$0xff]
        %v572 = vld [vmem:[%s466 + $0x98] sm:$0xff]
        %v573 = vld [vmem:[%s466 + $0xa0] sm:$0xff]
        %v574 = vld [vmem:[%s466 + $0xa8] sm:$0xff]
        %v575 = vld [vmem:[%s466 + $0xb0] sm:$0xff]
        %v576 = vld [vmem:[%s466 + $0xb8] sm:$0xff]
        %v577 = vld [vmem:[%s466 + $0xc0] sm:$0xff]
        %v578 = vld [vmem:[%s466 + $0xc8] sm:$0xff]
        %v579 = vld [vmem:[%s466 + $0xd0] sm:$0xff]
        %v580 = vld [vmem:[%s466 + $0xd8] sm:$0xff]
        %v581 = vld [vmem:[%s466 + $0xe0] sm:$0xff]
        %v582 = vld [vmem:[%s466 + $0xe8] sm:$0xff]
        %v583 = vld [vmem:[%s466 + $0xf0] sm:$0xff]
        %v584 = vld [vmem:[%s466 + $0xf8] sm:$0xff]
        %v585 = vld [vmem:[%s466 + $0x100] sm:$0xff]
        %v586 = vld [vmem:[%s466 + $0x108] sm:$0xff]
        %v587 = vld [vmem:[%s466 + $0x110] sm:$0xff]
        %v588 = vld [vmem:[%s466 + $0x118] sm:$0xff]
        %v589 = vld [vmem:[%s466 + $0x120] sm:$0xff]
        %v590 = vld [vmem:[%s466 + $0x128] sm:$0xff]
        %v591 = vld [vmem:[%s466 + $0x130] sm:$0xff]
        %v592 = vld [vmem:[%s466 + $0x138] sm:$0xff]
        %v593 = vld [vmem:[%s466 + $0x140] sm:$0xff]
        %v594 = vld [vmem:[%s466 + $0x148] sm:$0xff]
        %v595 = vld [vmem:[%s466 + $0x150] sm:$0xff]
        %v596 = vld [vmem:[%s466 + $0x158] sm:$0xff]
        %v597 = vld [vmem:[%s466 + $0x160] sm:$0xff]
        %v598 = vld [vmem:[%s466 + $0x168] sm:$0xff]
        %v599 = vld [vmem:[%s466 + $0x170] sm:$0xff]
        %v600 = vld [vmem:[%s466 + $0x178] sm:$0xff]
        %v601 = vpack.c.bf16 %v556, %v553
        %v602 = vpack.c.bf16 %v557, %v554
        %v603 = vpack.c.bf16 %v558, %v555
        %v604 = vpack.c.bf16 %v562, %v559
        %v605 = vpack.c.bf16 %v563, %v560
        %v606 = vpack.c.bf16 %v564, %v561
        %v607 = vpack.c.bf16 %v568, %v565
        %v608 = vpack.c.bf16 %v569, %v566
        %v609 = vpack.c.bf16 %v570, %v567
        %v610 = vpack.c.bf16 %v574, %v571
        %v611 = vpack.c.bf16 %v575, %v572
        %v612 = vpack.c.bf16 %v576, %v573
        %v613 = vpack.c.bf16 %v580, %v577
        %v614 = vpack.c.bf16 %v581, %v578
        %v615 = vpack.c.bf16 %v582, %v579
        %v616 = vpack.c.bf16 %v586, %v583
        %v617 = vpack.c.bf16 %v587, %v584
        %v618 = vpack.c.bf16 %v588, %v585
        %v619 = vpack.c.bf16 %v592, %v589
        %v620 = vpack.c.bf16 %v593, %v590
        %v621 = vpack.c.bf16 %v594, %v591
        %v622 = vpack.c.bf16 %v598, %v595
        %v623 = vpack.c.bf16 %v599, %v596
        %v624 = vpack.c.bf16 %v600, %v597
        %v625 = vld [vmem:[#allocation5] sm:$0xff]
        %v626 = vld [vmem:[#allocation5 + $0x8] sm:$0xff]
        %v627 = vld [vmem:[#allocation5 + $0x10] sm:$0xff]
        %v628 = vld [vmem:[#allocation5 + $0x18] sm:$0xff]
        %v629 = vld [vmem:[#allocation5 + $0x20] sm:$0xff]
        %v630 = vld [vmem:[#allocation5 + $0x28] sm:$0xff]
        %v631 = vld [vmem:[#allocation5 + $0x30] sm:$0xff]
        %v632 = vld [vmem:[#allocation5 + $0x38] sm:$0xff]
        %v633 = vld [vmem:[#allocation5 + $0x40] sm:$0xff]
        %v634 = vld [vmem:[#allocation5 + $0x48] sm:$0xff]
        %v635 = vld [vmem:[#allocation5 + $0x50] sm:$0xff]
        %v636 = vld [vmem:[#allocation5 + $0x58] sm:$0xff]
        %v637 = vld [vmem:[#allocation5 + $0x60] sm:$0xff]
        %v638 = vld [vmem:[#allocation5 + $0x68] sm:$0xff]
        %v639 = vld [vmem:[#allocation5 + $0x70] sm:$0xff]
        %v640 = vld [vmem:[#allocation5 + $0x78] sm:$0xff]
        %v641 = vld [vmem:[#allocation5 + $0x80] sm:$0xff]
        %v642 = vld [vmem:[#allocation5 + $0x88] sm:$0xff]
        %v643 = vld [vmem:[#allocation5 + $0x90] sm:$0xff]
        %v644 = vld [vmem:[#allocation5 + $0x98] sm:$0xff]
        %v645 = vld [vmem:[#allocation5 + $0xa0] sm:$0xff]
        %v646 = vld [vmem:[#allocation5 + $0xa8] sm:$0xff]
        %v647 = vld [vmem:[#allocation5 + $0xb0] sm:$0xff]
        %v648 = vld [vmem:[#allocation5 + $0xb8] sm:$0xff]
        %v649 = vld [vmem:[#allocation5 + $0xc0] sm:$0xff]
        %v650 = vld [vmem:[#allocation5 + $0xc8] sm:$0xff]
        %v651 = vld [vmem:[#allocation5 + $0xd0] sm:$0xff]
        %v652 = vld [vmem:[#allocation5 + $0xd8] sm:$0xff]
        %v653 = vld [vmem:[#allocation5 + $0xe0] sm:$0xff]
        %v654 = vld [vmem:[#allocation5 + $0xe8] sm:$0xff]
        %v655 = vld [vmem:[#allocation5 + $0xf0] sm:$0xff]
        %v656 = vld [vmem:[#allocation5 + $0xf8] sm:$0xff]
        %v657 = vld [vmem:[#allocation5 + $0x100] sm:$0xff]
        %v658 = vld [vmem:[#allocation5 + $0x108] sm:$0xff]
        %v659 = vld [vmem:[#allocation5 + $0x110] sm:$0xff]
        %v660 = vld [vmem:[#allocation5 + $0x118] sm:$0xff]
        %v661 = vld [vmem:[#allocation5 + $0x120] sm:$0xff]
        %v662 = vld [vmem:[#allocation5 + $0x128] sm:$0xff]
        %v663 = vld [vmem:[#allocation5 + $0x130] sm:$0xff]
        %v664 = vld [vmem:[#allocation5 + $0x138] sm:$0xff]
        %v665 = vld [vmem:[#allocation5 + $0x140] sm:$0xff]
        %v666 = vld [vmem:[#allocation5 + $0x148] sm:$0xff]
        %v667 = vld [vmem:[#allocation5 + $0x150] sm:$0xff]
        %v668 = vld [vmem:[#allocation5 + $0x158] sm:$0xff]
        %v669 = vld [vmem:[#allocation5 + $0x160] sm:$0xff]
        %v670 = vld [vmem:[#allocation5 + $0x168] sm:$0xff]
        %v671 = vld [vmem:[#allocation5 + $0x170] sm:$0xff]
        %v672 = vld [vmem:[#allocation5 + $0x178] sm:$0xff]
        %v673 = vld [vmem:[#allocation5 + $0x180] sm:$0xff]
        %v674 = vld [vmem:[#allocation5 + $0x188] sm:$0xff]
        %v675 = vld [vmem:[#allocation5 + $0x190] sm:$0xff]
        %v676 = vld [vmem:[#allocation5 + $0x198] sm:$0xff]
        %v677 = vld [vmem:[#allocation5 + $0x1a0] sm:$0xff]
        %v678 = vld [vmem:[#allocation5 + $0x1a8] sm:$0xff]
        %v679 = vld [vmem:[#allocation5 + $0x1b0] sm:$0xff]
        %v680 = vld [vmem:[#allocation5 + $0x1b8] sm:$0xff]
        %v681 = vld [vmem:[#allocation5 + $0x1c0] sm:$0xff]
        %v682 = vld [vmem:[#allocation5 + $0x1c8] sm:$0xff]
        %v683 = vld [vmem:[#allocation5 + $0x1d0] sm:$0xff]
        %v684 = vld [vmem:[#allocation5 + $0x1d8] sm:$0xff]
        %v685 = vld [vmem:[#allocation5 + $0x1e0] sm:$0xff]
        %v686 = vld [vmem:[#allocation5 + $0x1e8] sm:$0xff]
        %v687 = vld [vmem:[#allocation5 + $0x1f0] sm:$0xff]
        %v688 = vld [vmem:[#allocation5 + $0x1f8] sm:$0xff]
        %v689 = vld [vmem:[#allocation5 + $0x200] sm:$0xff]
        %v690 = vld [vmem:[#allocation5 + $0x208] sm:$0xff]
        %v691 = vld [vmem:[#allocation5 + $0x210] sm:$0xff]
        %v692 = vld [vmem:[#allocation5 + $0x218] sm:$0xff]
        %v693 = vld [vmem:[#allocation5 + $0x220] sm:$0xff]
        %v694 = vld [vmem:[#allocation5 + $0x228] sm:$0xff]
        %v695 = vld [vmem:[#allocation5 + $0x230] sm:$0xff]
        %v696 = vld [vmem:[#allocation5 + $0x238] sm:$0xff]
        %v697 = vld [vmem:[#allocation5 + $0x240] sm:$0xff]
        %v698 = vld [vmem:[#allocation5 + $0x248] sm:$0xff]
        %v699 = vld [vmem:[#allocation5 + $0x250] sm:$0xff]
        %v700 = vld [vmem:[#allocation5 + $0x258] sm:$0xff]
        %v701 = vld [vmem:[#allocation5 + $0x260] sm:$0xff]
        %v702 = vld [vmem:[#allocation5 + $0x268] sm:$0xff]
        %v703 = vld [vmem:[#allocation5 + $0x270] sm:$0xff]
        %v704 = vld [vmem:[#allocation5 + $0x278] sm:$0xff]
        %v705 = vld [vmem:[#allocation5 + $0x280] sm:$0xff]
        %v706 = vld [vmem:[#allocation5 + $0x288] sm:$0xff]
        %v707 = vld [vmem:[#allocation5 + $0x290] sm:$0xff]
        %v708 = vld [vmem:[#allocation5 + $0x298] sm:$0xff]
        %v709 = vld [vmem:[#allocation5 + $0x2a0] sm:$0xff]
        %v710 = vld [vmem:[#allocation5 + $0x2a8] sm:$0xff]
        %v711 = vld [vmem:[#allocation5 + $0x2b0] sm:$0xff]
        %v712 = vld [vmem:[#allocation5 + $0x2b8] sm:$0xff]
        %v713 = vld [vmem:[#allocation5 + $0x2c0] sm:$0x77]
        %v714 = vld [vmem:[#allocation5 + $0x2c8] sm:$0x77]
        %v715 = vld [vmem:[#allocation7] sm:$0xf]
        %v717 = vlaneseq
        %v718 = vshrl.u32 %v717, 7
        %v719 = vsub.s32 0, %v718
        %v720 = vrot.slane %v715, %v719
        %v721 = vlaneseq
        %v722 = vshrl.u32 %v721, 7
        %v723 = vsub.s32 1, %v722
        %v724 = vrot.slane %v715, %v723
        %v725 = vlaneseq
        %v726 = vshrl.u32 %v725, 7
        %v727 = vsub.s32 2, %v726
        %v728 = vrot.slane %v715, %v727
        %v729 = vlaneseq
        %v730 = vshrl.u32 %v729, 7
        %v731 = vsub.s32 3, %v730
        %v732 = vrot.slane %v715, %v731
        %v827 = vunpack.c.l.b16 %v625
        %v828 = vunpack.c.h.b16 %v625
        %v829 = vunpack.c.l.b16 %v626
        %v830 = vunpack.c.h.b16 %v626
        %v831 = vunpack.c.l.b16 %v627
        %v832 = vunpack.c.h.b16 %v627
        %v833 = vunpack.c.l.b16 %v628
        %v834 = vunpack.c.h.b16 %v628
        %v835 = vunpack.c.l.b16 %v629
        %v836 = vunpack.c.h.b16 %v629
        %v837 = vunpack.c.l.b16 %v630
        %v838 = vunpack.c.h.b16 %v630
        %v839 = vunpack.c.l.b16 %v631
        %v840 = vunpack.c.h.b16 %v631
        %v841 = vunpack.c.l.b16 %v632
        %v842 = vunpack.c.h.b16 %v632
        %v843 = vunpack.c.l.b16 %v633
        %v844 = vunpack.c.h.b16 %v633
        %v845 = vunpack.c.l.b16 %v634
        %v846 = vunpack.c.h.b16 %v634
        %v847 = vunpack.c.l.b16 %v635
        %v848 = vunpack.c.h.b16 %v635
        %v849 = vunpack.c.l.b16 %v636
        %v850 = vunpack.c.h.b16 %v636
        %v851 = vunpack.c.l.b16 %v637
        %v852 = vunpack.c.h.b16 %v637
        %v853 = vunpack.c.l.b16 %v638
        %v854 = vunpack.c.h.b16 %v638
        %v855 = vunpack.c.l.b16 %v639
        %v856 = vunpack.c.h.b16 %v639
        %v857 = vunpack.c.l.b16 %v640
        %v858 = vunpack.c.h.b16 %v640
        %v859 = vunpack.c.l.b16 %v641
        %v860 = vunpack.c.h.b16 %v641
        %v861 = vunpack.c.l.b16 %v642
        %v862 = vunpack.c.h.b16 %v642
        %v863 = vunpack.c.l.b16 %v643
        %v864 = vunpack.c.h.b16 %v643
        %v865 = vunpack.c.l.b16 %v644
        %v866 = vunpack.c.h.b16 %v644
        %v867 = vunpack.c.l.b16 %v645
        %v868 = vunpack.c.h.b16 %v645
        %v869 = vunpack.c.l.b16 %v646
        %v870 = vunpack.c.h.b16 %v646
        %v871 = vunpack.c.l.b16 %v647
        %v872 = vunpack.c.h.b16 %v647
        %v873 = vunpack.c.l.b16 %v648
        %v874 = vunpack.c.h.b16 %v648
        %v875 = vunpack.c.l.b16 %v649
        %v876 = vunpack.c.h.b16 %v649
        %v877 = vunpack.c.l.b16 %v650
        %v878 = vunpack.c.h.b16 %v650
        %v879 = vunpack.c.l.b16 %v651
        %v880 = vunpack.c.h.b16 %v651
        %v881 = vunpack.c.l.b16 %v652
        %v882 = vunpack.c.h.b16 %v652
        %v883 = vunpack.c.l.b16 %v653
        %v884 = vunpack.c.h.b16 %v653
        %v885 = vunpack.c.l.b16 %v654
        %v886 = vunpack.c.h.b16 %v654
        %v887 = vunpack.c.l.b16 %v655
        %v888 = vunpack.c.h.b16 %v655
        %v889 = vunpack.c.l.b16 %v656
        %v890 = vunpack.c.h.b16 %v656
        %v891 = vunpack.c.l.b16 %v657
        %v892 = vunpack.c.h.b16 %v657
        %v893 = vunpack.c.l.b16 %v658
        %v894 = vunpack.c.h.b16 %v658
        %v895 = vunpack.c.l.b16 %v659
        %v896 = vunpack.c.h.b16 %v659
        %v897 = vunpack.c.l.b16 %v660
        %v898 = vunpack.c.h.b16 %v660
        %v899 = vunpack.c.l.b16 %v661
        %v900 = vunpack.c.h.b16 %v661
        %v901 = vunpack.c.l.b16 %v662
        %v902 = vunpack.c.h.b16 %v662
        %v903 = vunpack.c.l.b16 %v663
        %v904 = vunpack.c.h.b16 %v663
        %v905 = vunpack.c.l.b16 %v664
        %v906 = vunpack.c.h.b16 %v664
        %v907 = vunpack.c.l.b16 %v665
        %v908 = vunpack.c.h.b16 %v665
        %v909 = vunpack.c.l.b16 %v666
        %v910 = vunpack.c.h.b16 %v666
        %v911 = vunpack.c.l.b16 %v667
        %v912 = vunpack.c.h.b16 %v667
        %v913 = vunpack.c.l.b16 %v668
        %v914 = vunpack.c.h.b16 %v668
        %v915 = vunpack.c.l.b16 %v669
        %v916 = vunpack.c.h.b16 %v669
        %v917 = vunpack.c.l.b16 %v670
        %v918 = vunpack.c.h.b16 %v670
        %v919 = vunpack.c.l.b16 %v671
        %v920 = vunpack.c.h.b16 %v671
        %v921 = vunpack.c.l.b16 %v672
        %v922 = vunpack.c.h.b16 %v672
        %v923 = vunpack.c.l.b16 %v673
        %v924 = vunpack.c.h.b16 %v673
        %v925 = vunpack.c.l.b16 %v674
        %v926 = vunpack.c.h.b16 %v674
        %v927 = vunpack.c.l.b16 %v675
        %v928 = vunpack.c.h.b16 %v675
        %v929 = vunpack.c.l.b16 %v676
        %v930 = vunpack.c.h.b16 %v676
        %v931 = vunpack.c.l.b16 %v677
        %v932 = vunpack.c.h.b16 %v677
        %v933 = vunpack.c.l.b16 %v678
        %v934 = vunpack.c.h.b16 %v678
        %v935 = vunpack.c.l.b16 %v679
        %v936 = vunpack.c.h.b16 %v679
        %v937 = vunpack.c.l.b16 %v680
        %v938 = vunpack.c.h.b16 %v680
        %v939 = vunpack.c.l.b16 %v681
        %v940 = vunpack.c.h.b16 %v681
        %v941 = vunpack.c.l.b16 %v682
        %v942 = vunpack.c.h.b16 %v682
        %v943 = vunpack.c.l.b16 %v683
        %v944 = vunpack.c.h.b16 %v683
        %v945 = vunpack.c.l.b16 %v684
        %v946 = vunpack.c.h.b16 %v684
        %v947 = vunpack.c.l.b16 %v685
        %v948 = vunpack.c.h.b16 %v685
        %v949 = vunpack.c.l.b16 %v686
        %v950 = vunpack.c.h.b16 %v686
        %v951 = vunpack.c.l.b16 %v687
        %v952 = vunpack.c.h.b16 %v687
        %v953 = vunpack.c.l.b16 %v688
        %v954 = vunpack.c.h.b16 %v688
        %v955 = vunpack.c.l.b16 %v689
        %v956 = vunpack.c.h.b16 %v689
        %v957 = vunpack.c.l.b16 %v690
        %v958 = vunpack.c.h.b16 %v690
        %v959 = vunpack.c.l.b16 %v691
        %v960 = vunpack.c.h.b16 %v691
        %v961 = vunpack.c.l.b16 %v692
        %v962 = vunpack.c.h.b16 %v692
        %v963 = vunpack.c.l.b16 %v693
        %v964 = vunpack.c.h.b16 %v693
        %v965 = vunpack.c.l.b16 %v694
        %v966 = vunpack.c.h.b16 %v694
        %v967 = vunpack.c.l.b16 %v695
        %v968 = vunpack.c.h.b16 %v695
        %v969 = vunpack.c.l.b16 %v696
        %v970 = vunpack.c.h.b16 %v696
        %v971 = vunpack.c.l.b16 %v697
        %v972 = vunpack.c.h.b16 %v697
        %v973 = vunpack.c.l.b16 %v698
        %v974 = vunpack.c.h.b16 %v698
        %v975 = vunpack.c.l.b16 %v699
        %v976 = vunpack.c.h.b16 %v699
        %v977 = vunpack.c.l.b16 %v700
        %v978 = vunpack.c.h.b16 %v700
        %v979 = vunpack.c.l.b16 %v701
        %v980 = vunpack.c.h.b16 %v701
        %v981 = vunpack.c.l.b16 %v702
        %v982 = vunpack.c.h.b16 %v702
        %v983 = vunpack.c.l.b16 %v703
        %v984 = vunpack.c.h.b16 %v703
        %v985 = vunpack.c.l.b16 %v704
        %v986 = vunpack.c.h.b16 %v704
        %v987 = vunpack.c.l.b16 %v705
        %v988 = vunpack.c.h.b16 %v705
        %v989 = vunpack.c.l.b16 %v706
        %v990 = vunpack.c.h.b16 %v706
        %v991 = vunpack.c.l.b16 %v707
        %v992 = vunpack.c.h.b16 %v707
        %v993 = vunpack.c.l.b16 %v708
        %v994 = vunpack.c.h.b16 %v708
        %v995 = vunpack.c.l.b16 %v709
        %v996 = vunpack.c.h.b16 %v709
        %v997 = vunpack.c.l.b16 %v710
        %v998 = vunpack.c.h.b16 %v710
        %v999 = vunpack.c.l.b16 %v711
        %v1000 = vunpack.c.h.b16 %v711
        %v1001 = vunpack.c.l.b16 %v712
        %v1002 = vunpack.c.h.b16 %v712
        %v1003 = vunpack.c.l.b16 %v713
        %v1004 = vunpack.c.h.b16 %v713
        %v1005 = vunpack.c.l.b16 %v714
        %v1006 = vunpack.c.h.b16 %v714
        %v1007 = vpack.c.b16 %v831, %v827
        %v1008 = vpack.c.b16 %v832, %v828
        %v1009 = vpack.c.b16 %v833, %v829
        %v1010 = vpack.c.b16 %v834, %v830
        %v1011 = vpack.c.b16 %v839, %v835
        %v1012 = vpack.c.b16 %v840, %v836
        %v1013 = vpack.c.b16 %v841, %v837
        %v1014 = vpack.c.b16 %v842, %v838
        %v1015 = vpack.c.b16 %v847, %v843
        %v1016 = vpack.c.b16 %v848, %v844
        %v1017 = vpack.c.b16 %v849, %v845
        %v1018 = vpack.c.b16 %v850, %v846
        %v1019 = vpack.c.b16 %v855, %v851
        %v1020 = vpack.c.b16 %v856, %v852
        %v1021 = vpack.c.b16 %v857, %v853
        %v1022 = vpack.c.b16 %v858, %v854
        %v1023 = vpack.c.b16 %v863, %v859
        %v1024 = vpack.c.b16 %v864, %v860
        %v1025 = vpack.c.b16 %v865, %v861
        %v1026 = vpack.c.b16 %v866, %v862
        %v1027 = vpack.c.b16 %v871, %v867
        %v1028 = vpack.c.b16 %v872, %v868
        %v1029 = vpack.c.b16 %v873, %v869
        %v1030 = vpack.c.b16 %v874, %v870
        %v1031 = vpack.c.b16 %v879, %v875
        %v1032 = vpack.c.b16 %v880, %v876
        %v1033 = vpack.c.b16 %v881, %v877
        %v1034 = vpack.c.b16 %v882, %v878
        %v1035 = vpack.c.b16 %v887, %v883
        %v1036 = vpack.c.b16 %v888, %v884
        %v1037 = vpack.c.b16 %v889, %v885
        %v1038 = vpack.c.b16 %v890, %v886
        %v1039 = vpack.c.b16 %v895, %v891
        %v1040 = vpack.c.b16 %v896, %v892
        %v1041 = vpack.c.b16 %v897, %v893
        %v1042 = vpack.c.b16 %v898, %v894
        %v1043 = vpack.c.b16 %v903, %v899
        %v1044 = vpack.c.b16 %v904, %v900
        %v1045 = vpack.c.b16 %v905, %v901
        %v1046 = vpack.c.b16 %v906, %v902
        %v1047 = vpack.c.b16 %v911, %v907
        %v1048 = vpack.c.b16 %v912, %v908
        %v1049 = vpack.c.b16 %v913, %v909
        %v1050 = vpack.c.b16 %v914, %v910
        %v1051 = vpack.c.b16 %v919, %v915
        %v1052 = vpack.c.b16 %v920, %v916
        %v1053 = vpack.c.b16 %v921, %v917
        %v1054 = vpack.c.b16 %v922, %v918
        %v1055 = vpack.c.b16 %v927, %v923
        %v1056 = vpack.c.b16 %v928, %v924
        %v1057 = vpack.c.b16 %v929, %v925
        %v1058 = vpack.c.b16 %v930, %v926
        %v1059 = vpack.c.b16 %v935, %v931
        %v1060 = vpack.c.b16 %v936, %v932
        %v1061 = vpack.c.b16 %v937, %v933
        %v1062 = vpack.c.b16 %v938, %v934
        %v1063 = vpack.c.b16 %v943, %v939
        %v1064 = vpack.c.b16 %v944, %v940
        %v1065 = vpack.c.b16 %v945, %v941
        %v1066 = vpack.c.b16 %v946, %v942
        %v1067 = vpack.c.b16 %v951, %v947
        %v1068 = vpack.c.b16 %v952, %v948
        %v1069 = vpack.c.b16 %v953, %v949
        %v1070 = vpack.c.b16 %v954, %v950
        %v1071 = vpack.c.b16 %v959, %v955
        %v1072 = vpack.c.b16 %v960, %v956
        %v1073 = vpack.c.b16 %v961, %v957
        %v1074 = vpack.c.b16 %v962, %v958
        %v1075 = vpack.c.b16 %v967, %v963
        %v1076 = vpack.c.b16 %v968, %v964
        %v1077 = vpack.c.b16 %v969, %v965
        %v1078 = vpack.c.b16 %v970, %v966
        %v1079 = vpack.c.b16 %v975, %v971
        %v1080 = vpack.c.b16 %v976, %v972
        %v1081 = vpack.c.b16 %v977, %v973
        %v1082 = vpack.c.b16 %v978, %v974
        %v1083 = vpack.c.b16 %v983, %v979
        %v1084 = vpack.c.b16 %v984, %v980
        %v1085 = vpack.c.b16 %v985, %v981
        %v1086 = vpack.c.b16 %v986, %v982
        %v1087 = vpack.c.b16 %v991, %v987
        %v1088 = vpack.c.b16 %v992, %v988
        %v1089 = vpack.c.b16 %v993, %v989
        %v1090 = vpack.c.b16 %v994, %v990
        %v1091 = vpack.c.b16 %v999, %v995
        %v1092 = vpack.c.b16 %v1000, %v996
        %v1093 = vpack.c.b16 %v1001, %v997
        %v1094 = vpack.c.b16 %v1002, %v998
        %v1095 = vpack.c.b16 %v1003, %v1003
        %v1096 = vpack.c.b16 %v1004, %v1004
        %v1097 = vpack.c.b16 %v1005, %v1005
        %v1098 = vpack.c.b16 %v1006, %v1006
        %vm1187 = vcmask 834560
        %v1189 = vsel %vm1187, %v603, 0
        %v1192 = vsel %vm1187, %v606, 0
        %v1195 = vsel %vm1187, %v609, 0
        %v1198 = vsel %vm1187, %v612, 0
        %v1201 = vsel %vm1187, %v615, 0
        %v1204 = vsel %vm1187, %v618, 0
        %v1207 = vsel %vm1187, %v621, 0
        %v1210 = vsel %vm1187, %v624, 0
        %vm1212 = vcmask 1042432
        %v1214 = vsel %vm1212, %v1095, 0
        %v1217 = vsel %vm1212, %v1096, 0
        %v1220 = vsel %vm1212, %v1097, 0
        %v1223 = vsel %vm1212, %v1098, 0
        %1225 = vmatprep.subr.bf16.mxu0 %v1036
        %1226 = vmatpush1.bf16.msra.mxu0 %v1035
        %1227 = vmatprep.subr.bf16.mxu0 %v1032
        %1228 = vmatpush1.bf16.msra.mxu0 %v1031
        %1229 = vmatprep.subr.bf16.mxu0 %v1028
        %1230 = vmatpush1.bf16.msra.mxu0 %v1027
        %1231 = vmatprep.subr.bf16.mxu0 %v1024
        %1232 = vmatpush1.bf16.msra.mxu0 %v1023
        %1233 = vmatprep.subr.bf16.mxu0 %v1020
        %1234 = vmatpush1.bf16.msra.mxu0 %v1019
        %1235 = vmatprep.subr.bf16.mxu0 %v1016
        %1236 = vmatpush1.bf16.msra.mxu0 %v1015
        %1237 = vmatprep.subr.bf16.mxu0 %v1012
        %1238 = vmatpush1.bf16.msra.mxu0 %v1011
        %1239 = vmatprep.subr.bf16.mxu0 %v1008
        %1240 = vmatpush1.bf16.msra.mxu0 %v1007
        %1241 = vmatprep.subr.bf16.mxu0 %v1068
        %1242 = vmatpush2.bf16.msra.mxu0 %v1067
        %1243 = vmatprep.subr.bf16.mxu0 %v1064
        %1244 = vmatpush2.bf16.msra.mxu0 %v1063
        %1245 = vmatprep.subr.bf16.mxu0 %v1060
        %1246 = vmatpush2.bf16.msra.mxu0 %v1059
        %1247 = vmatprep.subr.bf16.mxu0 %v1056
        %1248 = vmatpush2.bf16.msra.mxu0 %v1055
        %1249 = vmatprep.subr.bf16.mxu0 %v1052
        %1250 = vmatpush2.bf16.msra.mxu0 %v1051
        %1251 = vmatprep.subr.bf16.mxu0 %v1048
        %1252 = vmatpush2.bf16.msra.mxu0 %v1047
        %1253 = vmatprep.subr.bf16.mxu0 %v1044
        %1254 = vmatpush2.bf16.msra.mxu0 %v1043
        %1255 = vmatprep.subr.bf16.mxu0 %v1040
        %1256 = vmatpush2.bf16.msra.mxu0 %v1039
        %1257 = vmatprep.mubr.bf16.mxu0 %v602
        %1258 = vmatmul.mubr.bf16.gmra.mxu0 %v601
        %v1259 = vpop.f32.mrf.mxu0
        %v1260 = vadd.f32 %v720, %v1259
        %v1261 = vpop.f32.mrf.mxu0
        %v1262 = vadd.f32 %v724, %v1261
        %v1263 = vpop.f32.mrf.mxu0
        %v1264 = vadd.f32 %v720, %v1263
        %v1265 = vpop.f32.mrf.mxu0
        %v1266 = vadd.f32 %v724, %v1265
        %1267 = vmatprep.mubr.bf16.mxu0 %v605
        %1268 = vmatmul.mubr.bf16.gmra.mxu0 %v604
        %v1269 = vpop.f32.mrf.mxu0
        %v1270 = vadd.f32 %v720, %v1269
        %v1271 = vpop.f32.mrf.mxu0
        %v1272 = vadd.f32 %v724, %v1271
        %v1273 = vpop.f32.mrf.mxu0
        %v1274 = vadd.f32 %v720, %v1273
        %v1275 = vpop.f32.mrf.mxu0
        %v1276 = vadd.f32 %v724, %v1275
        %1277 = vmatprep.mubr.bf16.mxu0 %v608
        %1278 = vmatmul.mubr.bf16.gmra.mxu0 %v607
        %v1279 = vpop.f32.mrf.mxu0
        %v1280 = vadd.f32 %v720, %v1279
        %v1281 = vpop.f32.mrf.mxu0
        %v1282 = vadd.f32 %v724, %v1281
        %v1283 = vpop.f32.mrf.mxu0
        %v1284 = vadd.f32 %v720, %v1283
        %v1285 = vpop.f32.mrf.mxu0
        %v1286 = vadd.f32 %v724, %v1285
        %1287 = vmatprep.mubr.bf16.mxu0 %v611
        %1288 = vmatmul.mubr.bf16.gmra.mxu0 %v610
        %v1289 = vpop.f32.mrf.mxu0
        %v1290 = vadd.f32 %v720, %v1289
        %v1291 = vpop.f32.mrf.mxu0
        %v1292 = vadd.f32 %v724, %v1291
        %v1293 = vpop.f32.mrf.mxu0
        %v1294 = vadd.f32 %v720, %v1293
        %v1295 = vpop.f32.mrf.mxu0
        %v1296 = vadd.f32 %v724, %v1295
        %1297 = vmatprep.mubr.bf16.mxu0 %v614
        %1298 = vmatmul.mubr.bf16.gmra.mxu0 %v613
        %v1299 = vpop.f32.mrf.mxu0
        %v1300 = vadd.f32 %v720, %v1299
        %v1301 = vpop.f32.mrf.mxu0
        %v1302 = vadd.f32 %v724, %v1301
        %v1303 = vpop.f32.mrf.mxu0
        %v1304 = vadd.f32 %v720, %v1303
        %v1305 = vpop.f32.mrf.mxu0
        %v1306 = vadd.f32 %v724, %v1305
        %1307 = vmatprep.mubr.bf16.mxu0 %v617
        %1308 = vmatmul.mubr.bf16.gmra.mxu0 %v616
        %v1309 = vpop.f32.mrf.mxu0
        %v1310 = vadd.f32 %v720, %v1309
        %v1311 = vpop.f32.mrf.mxu0
        %v1312 = vadd.f32 %v724, %v1311
        %v1313 = vpop.f32.mrf.mxu0
        %v1314 = vadd.f32 %v720, %v1313
        %v1315 = vpop.f32.mrf.mxu0
        %v1316 = vadd.f32 %v724, %v1315
        %1317 = vmatprep.mubr.bf16.mxu0 %v620
        %1318 = vmatmul.mubr.bf16.gmra.mxu0 %v619
        %v1319 = vpop.f32.mrf.mxu0
        %v1320 = vadd.f32 %v720, %v1319
        %v1321 = vpop.f32.mrf.mxu0
        %v1322 = vadd.f32 %v724, %v1321
        %v1323 = vpop.f32.mrf.mxu0
        %v1324 = vadd.f32 %v720, %v1323
        %v1325 = vpop.f32.mrf.mxu0
        %v1326 = vadd.f32 %v724, %v1325
        %1327 = vmatprep.mubr.bf16.mxu0 %v623
        %1328 = vmatmul.mubr.bf16.gmra.mxu0 %v622
        %v1329 = vpop.f32.mrf.mxu0
        %v1330 = vadd.f32 %v720, %v1329
        %v1331 = vpop.f32.mrf.mxu0
        %v1332 = vadd.f32 %v724, %v1331
        %v1333 = vpop.f32.mrf.mxu0
        %v1334 = vadd.f32 %v720, %v1333
        %v1335 = vpop.f32.mrf.mxu0
        %v1336 = vadd.f32 %v724, %v1335
        %1337 = vdwg.mxu0
        %1338 = vmatprep.subr.bf16.mxu0 0
        %1339 = vmatpush1.bf16.msra.mxu0 0
        %1340 = vmatprep.subr.bf16.mxu0 %v1217
        %1341 = vmatpush1.bf16.msra.mxu0 %v1214
        %1342 = vmatprep.subr.bf16.mxu0 %v1092
        %1343 = vmatpush1.bf16.msra.mxu0 %v1091
        %1344 = vmatprep.subr.bf16.mxu0 %v1088
        %1345 = vmatpush1.bf16.msra.mxu0 %v1087
        %1346 = vmatprep.subr.bf16.mxu0 %v1084
        %1347 = vmatpush1.bf16.msra.mxu0 %v1083
        %1348 = vmatprep.subr.bf16.mxu0 %v1080
        %1349 = vmatpush1.bf16.msra.mxu0 %v1079
        %1350 = vmatprep.subr.bf16.mxu0 %v1076
        %1351 = vmatpush1.bf16.msra.mxu0 %v1075
        %1352 = vmatprep.subr.bf16.mxu0 %v1072
        %1353 = vmatpush1.bf16.msra.mxu0 %v1071
        %1354 = vmatprep.subr.bf16.mxu0 0
        %1355 = vmatpush2.bf16.msra.mxu0 0
        %1356 = vmatprep.subr.bf16.mxu0 0
        %1357 = vmatpush2.bf16.msra.mxu0 0
        %1358 = vmatprep.subr.bf16.mxu0 0
        %1359 = vmatpush2.bf16.msra.mxu0 0
        %1360 = vmatprep.subr.bf16.mxu0 0
        %1361 = vmatpush2.bf16.msra.mxu0 0
        %1362 = vmatprep.subr.bf16.mxu0 0
        %1363 = vmatpush2.bf16.msra.mxu0 0
        %1364 = vmatprep.subr.bf16.mxu0 0
        %1365 = vmatpush2.bf16.msra.mxu0 0
        %1366 = vmatprep.subr.bf16.mxu0 0
        %1367 = vmatpush2.bf16.msra.mxu0 0
        %1368 = vmatprep.subr.bf16.mxu0 0
        %1369 = vmatpush2.bf16.msra.mxu0 0
        %1370 = vmatprep.mubr.bf16.mxu0 0
        %1371 = vmatmul.mubr.bf16.gmra.mxu0 %v1189
        %v1372 = vpop.f32.mrf.mxu0
        %v1373 = vadd.f32 %v1260, %v1372
        %v1374 = vpop.f32.mrf.mxu0
        %v1375 = vadd.f32 %v1262, %v1374
        %v1376 = vpop.f32.mrf.mxu0
        %v1377 = vadd.f32 %v1264, %v1376
        %v1378 = vpop.f32.mrf.mxu0
        %v1379 = vadd.f32 %v1266, %v1378
        %1380 = vmatprep.mubr.bf16.mxu0 0
        %1381 = vmatmul.mubr.bf16.gmra.mxu0 %v1192
        %v1382 = vpop.f32.mrf.mxu0
        %v1383 = vadd.f32 %v1270, %v1382
        %v1384 = vpop.f32.mrf.mxu0
        %v1385 = vadd.f32 %v1272, %v1384
        %v1386 = vpop.f32.mrf.mxu0
        %v1387 = vadd.f32 %v1274, %v1386
        %v1388 = vpop.f32.mrf.mxu0
        %v1389 = vadd.f32 %v1276, %v1388
        %1390 = vmatprep.mubr.bf16.mxu0 0
        %1391 = vmatmul.mubr.bf16.gmra.mxu0 %v1195
        %v1392 = vpop.f32.mrf.mxu0
        %v1393 = vadd.f32 %v1280, %v1392
        %v1394 = vpop.f32.mrf.mxu0
        %v1395 = vadd.f32 %v1282, %v1394
        %v1396 = vpop.f32.mrf.mxu0
        %v1397 = vadd.f32 %v1284, %v1396
        %v1398 = vpop.f32.mrf.mxu0
        %v1399 = vadd.f32 %v1286, %v1398
        %1400 = vmatprep.mubr.bf16.mxu0 0
        %1401 = vmatmul.mubr.bf16.gmra.mxu0 %v1198
        %v1402 = vpop.f32.mrf.mxu0
        %v1403 = vadd.f32 %v1290, %v1402
        %v1404 = vpop.f32.mrf.mxu0
        %v1405 = vadd.f32 %v1292, %v1404
        %v1406 = vpop.f32.mrf.mxu0
        %v1407 = vadd.f32 %v1294, %v1406
        %v1408 = vpop.f32.mrf.mxu0
        %v1409 = vadd.f32 %v1296, %v1408
        %1410 = vmatprep.mubr.bf16.mxu0 0
        %1411 = vmatmul.mubr.bf16.gmra.mxu0 %v1201
        %v1412 = vpop.f32.mrf.mxu0
        %v1413 = vadd.f32 %v1300, %v1412
        %v1414 = vpop.f32.mrf.mxu0
        %v1415 = vadd.f32 %v1302, %v1414
        %v1416 = vpop.f32.mrf.mxu0
        %v1417 = vadd.f32 %v1304, %v1416
        %v1418 = vpop.f32.mrf.mxu0
        %v1419 = vadd.f32 %v1306, %v1418
        %1420 = vmatprep.mubr.bf16.mxu0 0
        %1421 = vmatmul.mubr.bf16.gmra.mxu0 %v1204
        %v1422 = vpop.f32.mrf.mxu0
        %v1423 = vadd.f32 %v1310, %v1422
        %v1424 = vpop.f32.mrf.mxu0
        %v1425 = vadd.f32 %v1312, %v1424
        %v1426 = vpop.f32.mrf.mxu0
        %v1427 = vadd.f32 %v1314, %v1426
        %v1428 = vpop.f32.mrf.mxu0
        %v1429 = vadd.f32 %v1316, %v1428
        %1430 = vmatprep.mubr.bf16.mxu0 0
        %1431 = vmatmul.mubr.bf16.gmra.mxu0 %v1207
        %v1432 = vpop.f32.mrf.mxu0
        %v1433 = vadd.f32 %v1320, %v1432
        %v1434 = vpop.f32.mrf.mxu0
        %v1435 = vadd.f32 %v1322, %v1434
        %v1436 = vpop.f32.mrf.mxu0
        %v1437 = vadd.f32 %v1324, %v1436
        %v1438 = vpop.f32.mrf.mxu0
        %v1439 = vadd.f32 %v1326, %v1438
        %1440 = vmatprep.mubr.bf16.mxu0 0
        %1441 = vmatmul.mubr.bf16.gmra.mxu0 %v1210
        %v1442 = vpop.f32.mrf.mxu0
        %v1443 = vadd.f32 %v1330, %v1442
        %v1444 = vpop.f32.mrf.mxu0
        %v1445 = vadd.f32 %v1332, %v1444
        %v1446 = vpop.f32.mrf.mxu0
        %v1447 = vadd.f32 %v1334, %v1446
        %v1448 = vpop.f32.mrf.mxu0
        %v1449 = vadd.f32 %v1336, %v1448
        %1450 = vdwg.mxu0
        %1451 = vmatprep.subr.bf16.mxu0 %v1038
        %1452 = vmatpush1.bf16.msra.mxu0 %v1037
        %1453 = vmatprep.subr.bf16.mxu0 %v1034
        %1454 = vmatpush1.bf16.msra.mxu0 %v1033
        %1455 = vmatprep.subr.bf16.mxu0 %v1030
        %1456 = vmatpush1.bf16.msra.mxu0 %v1029
        %1457 = vmatprep.subr.bf16.mxu0 %v1026
        %1458 = vmatpush1.bf16.msra.mxu0 %v1025
        %1459 = vmatprep.subr.bf16.mxu0 %v1022
        %1460 = vmatpush1.bf16.msra.mxu0 %v1021
        %1461 = vmatprep.subr.bf16.mxu0 %v1018
        %1462 = vmatpush1.bf16.msra.mxu0 %v1017
        %1463 = vmatprep.subr.bf16.mxu0 %v1014
        %1464 = vmatpush1.bf16.msra.mxu0 %v1013
        %1465 = vmatprep.subr.bf16.mxu0 %v1010
        %1466 = vmatpush1.bf16.msra.mxu0 %v1009
        %1467 = vmatprep.subr.bf16.mxu0 %v1070
        %1468 = vmatpush2.bf16.msra.mxu0 %v1069
        %1469 = vmatprep.subr.bf16.mxu0 %v1066
        %1470 = vmatpush2.bf16.msra.mxu0 %v1065
        %1471 = vmatprep.subr.bf16.mxu0 %v1062
        %1472 = vmatpush2.bf16.msra.mxu0 %v1061
        %1473 = vmatprep.subr.bf16.mxu0 %v1058
        %1474 = vmatpush2.bf16.msra.mxu0 %v1057
        %1475 = vmatprep.subr.bf16.mxu0 %v1054
        %1476 = vmatpush2.bf16.msra.mxu0 %v1053
        %1477 = vmatprep.subr.bf16.mxu0 %v1050
        %1478 = vmatpush2.bf16.msra.mxu0 %v1049
        %1479 = vmatprep.subr.bf16.mxu0 %v1046
        %1480 = vmatpush2.bf16.msra.mxu0 %v1045
        %1481 = vmatprep.subr.bf16.mxu0 %v1042
        %1482 = vmatpush2.bf16.msra.mxu0 %v1041
        %1483 = vmatprep.mubr.bf16.mxu0 %v602
        %1484 = vmatmul.mubr.bf16.gmra.mxu0 %v601
        %v1485 = vpop.f32.mrf.mxu0
        %v1486 = vadd.f32 %v728, %v1485
        %v1487 = vpop.f32.mrf.mxu0
        %v1488 = vadd.f32 %v732, %v1487
        %v1489 = vpop.f32.mrf.mxu0
        %v1490 = vadd.f32 %v728, %v1489
        %v1491 = vpop.f32.mrf.mxu0
        %v1492 = vadd.f32 %v732, %v1491
        %1493 = vmatprep.mubr.bf16.mxu0 %v605
        %1494 = vmatmul.mubr.bf16.gmra.mxu0 %v604
        %v1495 = vpop.f32.mrf.mxu0
        %v1496 = vadd.f32 %v728, %v1495
        %v1497 = vpop.f32.mrf.mxu0
        %v1498 = vadd.f32 %v732, %v1497
        %v1499 = vpop.f32.mrf.mxu0
        %v1500 = vadd.f32 %v728, %v1499
        %v1501 = vpop.f32.mrf.mxu0
        %v1502 = vadd.f32 %v732, %v1501
        %1503 = vmatprep.mubr.bf16.mxu0 %v608
        %1504 = vmatmul.mubr.bf16.gmra.mxu0 %v607
        %v1505 = vpop.f32.mrf.mxu0
        %v1506 = vadd.f32 %v728, %v1505
        %v1507 = vpop.f32.mrf.mxu0
        %v1508 = vadd.f32 %v732, %v1507
        %v1509 = vpop.f32.mrf.mxu0
        %v1510 = vadd.f32 %v728, %v1509
        %v1511 = vpop.f32.mrf.mxu0
        %v1512 = vadd.f32 %v732, %v1511
        %1513 = vmatprep.mubr.bf16.mxu0 %v611
        %1514 = vmatmul.mubr.bf16.gmra.mxu0 %v610
        %v1515 = vpop.f32.mrf.mxu0
        %v1516 = vadd.f32 %v728, %v1515
        %v1517 = vpop.f32.mrf.mxu0
        %v1518 = vadd.f32 %v732, %v1517
        %v1519 = vpop.f32.mrf.mxu0
        %v1520 = vadd.f32 %v728, %v1519
        %v1521 = vpop.f32.mrf.mxu0
        %v1522 = vadd.f32 %v732, %v1521
        %1523 = vmatprep.mubr.bf16.mxu0 %v614
        %1524 = vmatmul.mubr.bf16.gmra.mxu0 %v613
        %v1525 = vpop.f32.mrf.mxu0
        %v1526 = vadd.f32 %v728, %v1525
        %v1527 = vpop.f32.mrf.mxu0
        %v1528 = vadd.f32 %v732, %v1527
        %v1529 = vpop.f32.mrf.mxu0
        %v1530 = vadd.f32 %v728, %v1529
        %v1531 = vpop.f32.mrf.mxu0
        %v1532 = vadd.f32 %v732, %v1531
        %1533 = vmatprep.mubr.bf16.mxu0 %v617
        %1534 = vmatmul.mubr.bf16.gmra.mxu0 %v616
        %v1535 = vpop.f32.mrf.mxu0
        %v1536 = vadd.f32 %v728, %v1535
        %v1537 = vpop.f32.mrf.mxu0
        %v1538 = vadd.f32 %v732, %v1537
        %v1539 = vpop.f32.mrf.mxu0
        %v1540 = vadd.f32 %v728, %v1539
        %v1541 = vpop.f32.mrf.mxu0
        %v1542 = vadd.f32 %v732, %v1541
        %1543 = vmatprep.mubr.bf16.mxu0 %v620
        %1544 = vmatmul.mubr.bf16.gmra.mxu0 %v619
        %v1545 = vpop.f32.mrf.mxu0
        %v1546 = vadd.f32 %v728, %v1545
        %v1547 = vpop.f32.mrf.mxu0
        %v1548 = vadd.f32 %v732, %v1547
        %v1549 = vpop.f32.mrf.mxu0
        %v1550 = vadd.f32 %v728, %v1549
        %v1551 = vpop.f32.mrf.mxu0
        %v1552 = vadd.f32 %v732, %v1551
        %1553 = vmatprep.mubr.bf16.mxu0 %v623
        %1554 = vmatmul.mubr.bf16.gmra.mxu0 %v622
        %v1555 = vpop.f32.mrf.mxu0
        %v1556 = vadd.f32 %v728, %v1555
        %v1557 = vpop.f32.mrf.mxu0
        %v1558 = vadd.f32 %v732, %v1557
        %v1559 = vpop.f32.mrf.mxu0
        %v1560 = vadd.f32 %v728, %v1559
        %v1561 = vpop.f32.mrf.mxu0
        %v1562 = vadd.f32 %v732, %v1561
        %1563 = vdwg.mxu0
        %1564 = vmatprep.subr.bf16.mxu0 0
        %1565 = vmatpush1.bf16.msra.mxu0 0
        %1566 = vmatprep.subr.bf16.mxu0 %v1223
        %1567 = vmatpush1.bf16.msra.mxu0 %v1220
        %1568 = vmatprep.subr.bf16.mxu0 %v1094
        %1569 = vmatpush1.bf16.msra.mxu0 %v1093
        %1570 = vmatprep.subr.bf16.mxu0 %v1090
        %1571 = vmatpush1.bf16.msra.mxu0 %v1089
        %1572 = vmatprep.subr.bf16.mxu0 %v1086
        %1573 = vmatpush1.bf16.msra.mxu0 %v1085
        %1574 = vmatprep.subr.bf16.mxu0 %v1082
        %1575 = vmatpush1.bf16.msra.mxu0 %v1081
        %1576 = vmatprep.subr.bf16.mxu0 %v1078
        %1577 = vmatpush1.bf16.msra.mxu0 %v1077
        %1578 = vmatprep.subr.bf16.mxu0 %v1074
        %1579 = vmatpush1.bf16.msra.mxu0 %v1073
        %1580 = vmatprep.subr.bf16.mxu0 0
        %1581 = vmatpush2.bf16.msra.mxu0 0
        %1582 = vmatprep.subr.bf16.mxu0 0
        %1583 = vmatpush2.bf16.msra.mxu0 0
        %1584 = vmatprep.subr.bf16.mxu0 0
        %1585 = vmatpush2.bf16.msra.mxu0 0
        %1586 = vmatprep.subr.bf16.mxu0 0
        %1587 = vmatpush2.bf16.msra.mxu0 0
        %1588 = vmatprep.subr.bf16.mxu0 0
        %1589 = vmatpush2.bf16.msra.mxu0 0
        %1590 = vmatprep.subr.bf16.mxu0 0
        %1591 = vmatpush2.bf16.msra.mxu0 0
        %1592 = vmatprep.subr.bf16.mxu0 0
        %1593 = vmatpush2.bf16.msra.mxu0 0
        %1594 = vmatprep.subr.bf16.mxu0 0
        %1595 = vmatpush2.bf16.msra.mxu0 0
        %1596 = vmatprep.mubr.bf16.mxu0 0
        %1597 = vmatmul.mubr.bf16.gmra.mxu0 %v1189
        %v1598 = vpop.f32.mrf.mxu0
        %v1599 = vadd.f32 %v1486, %v1598
        %v1600 = vpop.f32.mrf.mxu0
        %v1601 = vadd.f32 %v1488, %v1600
        %v1602 = vpop.f32.mrf.mxu0
        %v1603 = vadd.f32 %v1490, %v1602
        %v1604 = vpop.f32.mrf.mxu0
        %v1605 = vadd.f32 %v1492, %v1604
        %1606 = vmatprep.mubr.bf16.mxu0 0
        %1607 = vmatmul.mubr.bf16.gmra.mxu0 %v1192
        %v1608 = vpop.f32.mrf.mxu0
        %v1609 = vadd.f32 %v1496, %v1608
        %v1610 = vpop.f32.mrf.mxu0
        %v1611 = vadd.f32 %v1498, %v1610
        %v1612 = vpop.f32.mrf.mxu0
        %v1613 = vadd.f32 %v1500, %v1612
        %v1614 = vpop.f32.mrf.mxu0
        %v1615 = vadd.f32 %v1502, %v1614
        %1616 = vmatprep.mubr.bf16.mxu0 0
        %1617 = vmatmul.mubr.bf16.gmra.mxu0 %v1195
        %v1618 = vpop.f32.mrf.mxu0
        %v1619 = vadd.f32 %v1506, %v1618
        %v1620 = vpop.f32.mrf.mxu0
        %v1621 = vadd.f32 %v1508, %v1620
        %v1622 = vpop.f32.mrf.mxu0
        %v1623 = vadd.f32 %v1510, %v1622
        %v1624 = vpop.f32.mrf.mxu0
        %v1625 = vadd.f32 %v1512, %v1624
        %1626 = vmatprep.mubr.bf16.mxu0 0
        %1627 = vmatmul.mubr.bf16.gmra.mxu0 %v1198
        %v1628 = vpop.f32.mrf.mxu0
        %v1629 = vadd.f32 %v1516, %v1628
        %v1630 = vpop.f32.mrf.mxu0
        %v1631 = vadd.f32 %v1518, %v1630
        %v1632 = vpop.f32.mrf.mxu0
        %v1633 = vadd.f32 %v1520, %v1632
        %v1634 = vpop.f32.mrf.mxu0
        %v1635 = vadd.f32 %v1522, %v1634
        %1636 = vmatprep.mubr.bf16.mxu0 0
        %1637 = vmatmul.mubr.bf16.gmra.mxu0 %v1201
        %v1638 = vpop.f32.mrf.mxu0
        %v1639 = vadd.f32 %v1526, %v1638
        %v1640 = vpop.f32.mrf.mxu0
        %v1641 = vadd.f32 %v1528, %v1640
        %v1642 = vpop.f32.mrf.mxu0
        %v1643 = vadd.f32 %v1530, %v1642
        %v1644 = vpop.f32.mrf.mxu0
        %v1645 = vadd.f32 %v1532, %v1644
        %1646 = vmatprep.mubr.bf16.mxu0 0
        %1647 = vmatmul.mubr.bf16.gmra.mxu0 %v1204
        %v1648 = vpop.f32.mrf.mxu0
        %v1649 = vadd.f32 %v1536, %v1648
        %v1650 = vpop.f32.mrf.mxu0
        %v1651 = vadd.f32 %v1538, %v1650
        %v1652 = vpop.f32.mrf.mxu0
        %v1653 = vadd.f32 %v1540, %v1652
        %v1654 = vpop.f32.mrf.mxu0
        %v1655 = vadd.f32 %v1542, %v1654
        %1656 = vmatprep.mubr.bf16.mxu0 0
        %1657 = vmatmul.mubr.bf16.gmra.mxu0 %v1207
        %v1658 = vpop.f32.mrf.mxu0
        %v1659 = vadd.f32 %v1546, %v1658
        %v1660 = vpop.f32.mrf.mxu0
        %v1661 = vadd.f32 %v1548, %v1660
        %v1662 = vpop.f32.mrf.mxu0
        %v1663 = vadd.f32 %v1550, %v1662
        %v1664 = vpop.f32.mrf.mxu0
        %v1665 = vadd.f32 %v1552, %v1664
        %1666 = vmatprep.mubr.bf16.mxu0 0
        %1667 = vmatmul.mubr.bf16.gmra.mxu0 %v1210
        %v1668 = vpop.f32.mrf.mxu0
        %v1669 = vadd.f32 %v1556, %v1668
        %v1670 = vpop.f32.mrf.mxu0
        %v1671 = vadd.f32 %v1558, %v1670
        %v1672 = vpop.f32.mrf.mxu0
        %v1673 = vadd.f32 %v1560, %v1672
        %v1674 = vpop.f32.mrf.mxu0
        %v1675 = vadd.f32 %v1562, %v1674
        %1676 = vdwg.mxu0
        %v1677 = vmax.f32 %v1373, 0.0
        %v1678 = vmax.f32 %v1375, 0.0
        %v1679 = vmax.f32 %v1599, 0.0
        %v1680 = vmax.f32 %v1601, 0.0
        %v1681 = vmax.f32 %v1377, 0.0
        %v1682 = vmax.f32 %v1379, 0.0
        %v1683 = vmax.f32 %v1603, 0.0
        %v1684 = vmax.f32 %v1605, 0.0
        %v1685 = vmax.f32 %v1383, 0.0
        %v1686 = vmax.f32 %v1385, 0.0
        %v1687 = vmax.f32 %v1609, 0.0
        %v1688 = vmax.f32 %v1611, 0.0
        %v1689 = vmax.f32 %v1387, 0.0
        %v1690 = vmax.f32 %v1389, 0.0
        %v1691 = vmax.f32 %v1613, 0.0
        %v1692 = vmax.f32 %v1615, 0.0
        %v1693 = vmax.f32 %v1393, 0.0
        %v1694 = vmax.f32 %v1395, 0.0
        %v1695 = vmax.f32 %v1619, 0.0
        %v1696 = vmax.f32 %v1621, 0.0
        %v1697 = vmax.f32 %v1397, 0.0
        %v1698 = vmax.f32 %v1399, 0.0
        %v1699 = vmax.f32 %v1623, 0.0
        %v1700 = vmax.f32 %v1625, 0.0
        %v1701 = vmax.f32 %v1403, 0.0
        %v1702 = vmax.f32 %v1405, 0.0
        %v1703 = vmax.f32 %v1629, 0.0
        %v1704 = vmax.f32 %v1631, 0.0
        %v1705 = vmax.f32 %v1407, 0.0
        %v1706 = vmax.f32 %v1409, 0.0
        %v1707 = vmax.f32 %v1633, 0.0
        %v1708 = vmax.f32 %v1635, 0.0
        %v1709 = vmax.f32 %v1413, 0.0
        %v1710 = vmax.f32 %v1415, 0.0
        %v1711 = vmax.f32 %v1639, 0.0
        %v1712 = vmax.f32 %v1641, 0.0
        %v1713 = vmax.f32 %v1417, 0.0
        %v1714 = vmax.f32 %v1419, 0.0
        %v1715 = vmax.f32 %v1643, 0.0
        %v1716 = vmax.f32 %v1645, 0.0
        %v1717 = vmax.f32 %v1423, 0.0
        %v1718 = vmax.f32 %v1425, 0.0
        %v1719 = vmax.f32 %v1649, 0.0
        %v1720 = vmax.f32 %v1651, 0.0
        %v1721 = vmax.f32 %v1427, 0.0
        %v1722 = vmax.f32 %v1429, 0.0
        %v1723 = vmax.f32 %v1653, 0.0
        %v1724 = vmax.f32 %v1655, 0.0
        %v1725 = vmax.f32 %v1433, 0.0
        %v1726 = vmax.f32 %v1435, 0.0
        %v1727 = vmax.f32 %v1659, 0.0
        %v1728 = vmax.f32 %v1661, 0.0
        %v1729 = vmax.f32 %v1437, 0.0
        %v1730 = vmax.f32 %v1439, 0.0
        %v1731 = vmax.f32 %v1663, 0.0
        %v1732 = vmax.f32 %v1665, 0.0
        %v1733 = vmax.f32 %v1443, 0.0
        %v1734 = vmax.f32 %v1445, 0.0
        %v1735 = vmax.f32 %v1669, 0.0
        %v1736 = vmax.f32 %v1671, 0.0
        %v1737 = vmax.f32 %v1447, 0.0
        %v1738 = vmax.f32 %v1449, 0.0
        %v1739 = vmax.f32 %v1673, 0.0
        %v1740 = vmax.f32 %v1675, 0.0
        %v1741 = vpack.c.bf16 %v1681, %v1677
        %v1742 = vpack.c.bf16 %v1682, %v1678
        %v1743 = vpack.c.bf16 %v1683, %v1679
        %v1744 = vpack.c.bf16 %v1684, %v1680
        %v1745 = vpack.c.bf16 %v1689, %v1685
        %v1746 = vpack.c.bf16 %v1690, %v1686
        %v1747 = vpack.c.bf16 %v1691, %v1687
        %v1748 = vpack.c.bf16 %v1692, %v1688
        %v1749 = vpack.c.bf16 %v1697, %v1693
        %v1750 = vpack.c.bf16 %v1698, %v1694
        %v1751 = vpack.c.bf16 %v1699, %v1695
        %v1752 = vpack.c.bf16 %v1700, %v1696
        %v1753 = vpack.c.bf16 %v1705, %v1701
        %v1754 = vpack.c.bf16 %v1706, %v1702
        %v1755 = vpack.c.bf16 %v1707, %v1703
        %v1756 = vpack.c.bf16 %v1708, %v1704
        %v1757 = vpack.c.bf16 %v1713, %v1709
        %v1758 = vpack.c.bf16 %v1714, %v1710
        %v1759 = vpack.c.bf16 %v1715, %v1711
        %v1760 = vpack.c.bf16 %v1716, %v1712
        %v1761 = vpack.c.bf16 %v1721, %v1717
        %v1762 = vpack.c.bf16 %v1722, %v1718
        %v1763 = vpack.c.bf16 %v1723, %v1719
        %v1764 = vpack.c.bf16 %v1724, %v1720
        %v1765 = vpack.c.bf16 %v1729, %v1725
        %v1766 = vpack.c.bf16 %v1730, %v1726
        %v1767 = vpack.c.bf16 %v1731, %v1727
        %v1768 = vpack.c.bf16 %v1732, %v1728
        %v1769 = vpack.c.bf16 %v1737, %v1733
        %v1770 = vpack.c.bf16 %v1738, %v1734
        %v1771 = vpack.c.bf16 %v1739, %v1735
        %v1772 = vpack.c.bf16 %v1740, %v1736
        %v1773 = vld [vmem:[#allocation8] sm:$0xff]
        %v1774 = vld [vmem:[#allocation8 + $0x8] sm:$0xff]
        %v1775 = vld [vmem:[#allocation8 + $0x10] sm:$0xff]
        %v1776 = vld [vmem:[#allocation8 + $0x18] sm:$0xff]
        %v1777 = vld [vmem:[#allocation8 + $0x20] sm:$0xff]
        %v1778 = vld [vmem:[#allocation8 + $0x28] sm:$0xff]
        %v1779 = vld [vmem:[#allocation8 + $0x30] sm:$0xff]
        %v1780 = vld [vmem:[#allocation8 + $0x38] sm:$0xff]
        %v1781 = vld [vmem:[#allocation8 + $0x40] sm:$0xff]
        %v1782 = vld [vmem:[#allocation8 + $0x48] sm:$0xff]
        %v1783 = vld [vmem:[#allocation8 + $0x50] sm:$0xff]
        %v1784 = vld [vmem:[#allocation8 + $0x58] sm:$0xff]
        %v1785 = vld [vmem:[#allocation8 + $0x60] sm:$0xff]
        %v1786 = vld [vmem:[#allocation8 + $0x68] sm:$0xff]
        %v1787 = vld [vmem:[#allocation8 + $0x70] sm:$0xff]
        %v1788 = vld [vmem:[#allocation8 + $0x78] sm:$0xff]
        %v1789 = vld [vmem:[#allocation8 + $0x80] sm:$0xff]
        %v1790 = vld [vmem:[#allocation8 + $0x88] sm:$0xff]
        %v1791 = vld [vmem:[#allocation8 + $0x90] sm:$0xff]
        %v1792 = vld [vmem:[#allocation8 + $0x98] sm:$0xff]
        %v1793 = vld [vmem:[#allocation8 + $0xa0] sm:$0xff]
        %v1794 = vld [vmem:[#allocation8 + $0xa8] sm:$0xff]
        %v1795 = vld [vmem:[#allocation8 + $0xb0] sm:$0xff]
        %v1796 = vld [vmem:[#allocation8 + $0xb8] sm:$0xff]
        %v1797 = vld [vmem:[#allocation8 + $0xc0] sm:$0xff]
        %v1798 = vld [vmem:[#allocation8 + $0xc8] sm:$0xff]
        %v1799 = vld [vmem:[#allocation8 + $0xd0] sm:$0xff]
        %v1800 = vld [vmem:[#allocation8 + $0xd8] sm:$0xff]
        %v1801 = vld [vmem:[#allocation8 + $0xe0] sm:$0xff]
        %v1802 = vld [vmem:[#allocation8 + $0xe8] sm:$0xff]
        %v1803 = vld [vmem:[#allocation8 + $0xf0] sm:$0xff]
        %v1804 = vld [vmem:[#allocation8 + $0xf8] sm:$0xff]
        %v1805 = vld [vmem:[#allocation8 + $0x100] sm:$0xff]
        %v1806 = vld [vmem:[#allocation8 + $0x108] sm:$0xff]
        %v1807 = vld [vmem:[#allocation8 + $0x110] sm:$0xff]
        %v1808 = vld [vmem:[#allocation8 + $0x118] sm:$0xff]
        %v1809 = vld [vmem:[#allocation8 + $0x120] sm:$0xff]
        %v1810 = vld [vmem:[#allocation8 + $0x128] sm:$0xff]
        %v1811 = vld [vmem:[#allocation8 + $0x130] sm:$0xff]
        %v1812 = vld [vmem:[#allocation8 + $0x138] sm:$0xff]
        %v1813 = vld [vmem:[#allocation8 + $0x140] sm:$0xff]
        %v1814 = vld [vmem:[#allocation8 + $0x148] sm:$0xff]
        %v1815 = vld [vmem:[#allocation8 + $0x150] sm:$0xff]
        %v1816 = vld [vmem:[#allocation8 + $0x158] sm:$0xff]
        %v1817 = vld [vmem:[#allocation8 + $0x160] sm:$0xff]
        %v1818 = vld [vmem:[#allocation8 + $0x168] sm:$0xff]
        %v1819 = vld [vmem:[#allocation8 + $0x170] sm:$0xff]
        %v1820 = vld [vmem:[#allocation8 + $0x178] sm:$0xff]
        %v1821 = vld [vmem:[#allocation8 + $0x180] sm:$0xff]
        %v1822 = vld [vmem:[#allocation8 + $0x188] sm:$0xff]
        %v1823 = vld [vmem:[#allocation8 + $0x190] sm:$0xff]
        %v1824 = vld [vmem:[#allocation8 + $0x198] sm:$0xff]
        %v1825 = vld [vmem:[#allocation8 + $0x1a0] sm:$0xff]
        %v1826 = vld [vmem:[#allocation8 + $0x1a8] sm:$0xff]
        %v1827 = vld [vmem:[#allocation8 + $0x1b0] sm:$0xff]
        %v1828 = vld [vmem:[#allocation8 + $0x1b8] sm:$0xff]
        %v1829 = vld [vmem:[#allocation8 + $0x1c0] sm:$0xff]
        %v1830 = vld [vmem:[#allocation8 + $0x1c8] sm:$0xff]
        %v1831 = vld [vmem:[#allocation8 + $0x1d0] sm:$0xff]
        %v1832 = vld [vmem:[#allocation8 + $0x1d8] sm:$0xff]
        %v1833 = vld [vmem:[#allocation8 + $0x1e0] sm:$0xff]
        %v1834 = vld [vmem:[#allocation8 + $0x1e8] sm:$0xff]
        %v1835 = vld [vmem:[#allocation8 + $0x1f0] sm:$0xff]
        %v1836 = vld [vmem:[#allocation8 + $0x1f8] sm:$0xff]
        %v1837 = vld [vmem:[%s4] sm:$0x3]
        %v1839 = vlaneseq
        %v1840 = vshrl.u32 %v1839, 7
        %v1841 = vsub.s32 0, %v1840
        %v1842 = vrot.slane %v1837, %v1841
        %v1843 = vlaneseq
        %v1844 = vshrl.u32 %v1843, 7
        %v1845 = vsub.s32 1, %v1844
        %v1846 = vrot.slane %v1837, %v1845
        %v1913 = vunpack.c.l.b16 %v1773
        %v1914 = vunpack.c.h.b16 %v1773
        %v1915 = vunpack.c.l.b16 %v1774
        %v1916 = vunpack.c.h.b16 %v1774
        %v1917 = vunpack.c.l.b16 %v1775
        %v1918 = vunpack.c.h.b16 %v1775
        %v1919 = vunpack.c.l.b16 %v1776
        %v1920 = vunpack.c.h.b16 %v1776
        %v1921 = vunpack.c.l.b16 %v1777
        %v1922 = vunpack.c.h.b16 %v1777
        %v1923 = vunpack.c.l.b16 %v1778
        %v1924 = vunpack.c.h.b16 %v1778
        %v1925 = vunpack.c.l.b16 %v1779
        %v1926 = vunpack.c.h.b16 %v1779
        %v1927 = vunpack.c.l.b16 %v1780
        %v1928 = vunpack.c.h.b16 %v1780
        %v1929 = vunpack.c.l.b16 %v1781
        %v1930 = vunpack.c.h.b16 %v1781
        %v1931 = vunpack.c.l.b16 %v1782
        %v1932 = vunpack.c.h.b16 %v1782
        %v1933 = vunpack.c.l.b16 %v1783
        %v1934 = vunpack.c.h.b16 %v1783
        %v1935 = vunpack.c.l.b16 %v1784
        %v1936 = vunpack.c.h.b16 %v1784
        %v1937 = vunpack.c.l.b16 %v1785
        %v1938 = vunpack.c.h.b16 %v1785
        %v1939 = vunpack.c.l.b16 %v1786
        %v1940 = vunpack.c.h.b16 %v1786
        %v1941 = vunpack.c.l.b16 %v1787
        %v1942 = vunpack.c.h.b16 %v1787
        %v1943 = vunpack.c.l.b16 %v1788
        %v1944 = vunpack.c.h.b16 %v1788
        %v1945 = vunpack.c.l.b16 %v1789
        %v1946 = vunpack.c.h.b16 %v1789
        %v1947 = vunpack.c.l.b16 %v1790
        %v1948 = vunpack.c.h.b16 %v1790
        %v1949 = vunpack.c.l.b16 %v1791
        %v1950 = vunpack.c.h.b16 %v1791
        %v1951 = vunpack.c.l.b16 %v1792
        %v1952 = vunpack.c.h.b16 %v1792
        %v1953 = vunpack.c.l.b16 %v1793
        %v1954 = vunpack.c.h.b16 %v1793
        %v1955 = vunpack.c.l.b16 %v1794
        %v1956 = vunpack.c.h.b16 %v1794
        %v1957 = vunpack.c.l.b16 %v1795
        %v1958 = vunpack.c.h.b16 %v1795
        %v1959 = vunpack.c.l.b16 %v1796
        %v1960 = vunpack.c.h.b16 %v1796
        %v1961 = vunpack.c.l.b16 %v1797
        %v1962 = vunpack.c.h.b16 %v1797
        %v1963 = vunpack.c.l.b16 %v1798
        %v1964 = vunpack.c.h.b16 %v1798
        %v1965 = vunpack.c.l.b16 %v1799
        %v1966 = vunpack.c.h.b16 %v1799
        %v1967 = vunpack.c.l.b16 %v1800
        %v1968 = vunpack.c.h.b16 %v1800
        %v1969 = vunpack.c.l.b16 %v1801
        %v1970 = vunpack.c.h.b16 %v1801
        %v1971 = vunpack.c.l.b16 %v1802
        %v1972 = vunpack.c.h.b16 %v1802
        %v1973 = vunpack.c.l.b16 %v1803
        %v1974 = vunpack.c.h.b16 %v1803
        %v1975 = vunpack.c.l.b16 %v1804
        %v1976 = vunpack.c.h.b16 %v1804
        %v1977 = vunpack.c.l.b16 %v1805
        %v1978 = vunpack.c.h.b16 %v1805
        %v1979 = vunpack.c.l.b16 %v1806
        %v1980 = vunpack.c.h.b16 %v1806
        %v1981 = vunpack.c.l.b16 %v1807
        %v1982 = vunpack.c.h.b16 %v1807
        %v1983 = vunpack.c.l.b16 %v1808
        %v1984 = vunpack.c.h.b16 %v1808
        %v1985 = vunpack.c.l.b16 %v1809
        %v1986 = vunpack.c.h.b16 %v1809
        %v1987 = vunpack.c.l.b16 %v1810
        %v1988 = vunpack.c.h.b16 %v1810
        %v1989 = vunpack.c.l.b16 %v1811
        %v1990 = vunpack.c.h.b16 %v1811
        %v1991 = vunpack.c.l.b16 %v1812
        %v1992 = vunpack.c.h.b16 %v1812
        %v1993 = vunpack.c.l.b16 %v1813
        %v1994 = vunpack.c.h.b16 %v1813
        %v1995 = vunpack.c.l.b16 %v1814
        %v1996 = vunpack.c.h.b16 %v1814
        %v1997 = vunpack.c.l.b16 %v1815
        %v1998 = vunpack.c.h.b16 %v1815
        %v1999 = vunpack.c.l.b16 %v1816
        %v2000 = vunpack.c.h.b16 %v1816
        %v2001 = vunpack.c.l.b16 %v1817
        %v2002 = vunpack.c.h.b16 %v1817
        %v2003 = vunpack.c.l.b16 %v1818
        %v2004 = vunpack.c.h.b16 %v1818
        %v2005 = vunpack.c.l.b16 %v1819
        %v2006 = vunpack.c.h.b16 %v1819
        %v2007 = vunpack.c.l.b16 %v1820
        %v2008 = vunpack.c.h.b16 %v1820
        %v2009 = vunpack.c.l.b16 %v1821
        %v2010 = vunpack.c.h.b16 %v1821
        %v2011 = vunpack.c.l.b16 %v1822
        %v2012 = vunpack.c.h.b16 %v1822
        %v2013 = vunpack.c.l.b16 %v1823
        %v2014 = vunpack.c.h.b16 %v1823
        %v2015 = vunpack.c.l.b16 %v1824
        %v2016 = vunpack.c.h.b16 %v1824
        %v2017 = vunpack.c.l.b16 %v1825
        %v2018 = vunpack.c.h.b16 %v1825
        %v2019 = vunpack.c.l.b16 %v1826
        %v2020 = vunpack.c.h.b16 %v1826
        %v2021 = vunpack.c.l.b16 %v1827
        %v2022 = vunpack.c.h.b16 %v1827
        %v2023 = vunpack.c.l.b16 %v1828
        %v2024 = vunpack.c.h.b16 %v1828
        %v2025 = vunpack.c.l.b16 %v1829
        %v2026 = vunpack.c.h.b16 %v1829
        %v2027 = vunpack.c.l.b16 %v1830
        %v2028 = vunpack.c.h.b16 %v1830
        %v2029 = vunpack.c.l.b16 %v1831
        %v2030 = vunpack.c.h.b16 %v1831
        %v2031 = vunpack.c.l.b16 %v1832
        %v2032 = vunpack.c.h.b16 %v1832
        %v2033 = vunpack.c.l.b16 %v1833
        %v2034 = vunpack.c.h.b16 %v1833
        %v2035 = vunpack.c.l.b16 %v1834
        %v2036 = vunpack.c.h.b16 %v1834
        %v2037 = vunpack.c.l.b16 %v1835
        %v2038 = vunpack.c.h.b16 %v1835
        %v2039 = vunpack.c.l.b16 %v1836
        %v2040 = vunpack.c.h.b16 %v1836
        %v2041 = vpack.c.b16 %v1915, %v1913
        %v2042 = vpack.c.b16 %v1916, %v1914
        %v2043 = vpack.c.b16 %v1919, %v1917
        %v2044 = vpack.c.b16 %v1920, %v1918
        %v2045 = vpack.c.b16 %v1923, %v1921
        %v2046 = vpack.c.b16 %v1924, %v1922
        %v2047 = vpack.c.b16 %v1927, %v1925
        %v2048 = vpack.c.b16 %v1928, %v1926
        %v2049 = vpack.c.b16 %v1931, %v1929
        %v2050 = vpack.c.b16 %v1932, %v1930
        %v2051 = vpack.c.b16 %v1935, %v1933
        %v2052 = vpack.c.b16 %v1936, %v1934
        %v2053 = vpack.c.b16 %v1939, %v1937
        %v2054 = vpack.c.b16 %v1940, %v1938
        %v2055 = vpack.c.b16 %v1943, %v1941
        %v2056 = vpack.c.b16 %v1944, %v1942
        %v2057 = vpack.c.b16 %v1947, %v1945
        %v2058 = vpack.c.b16 %v1948, %v1946
        %v2059 = vpack.c.b16 %v1951, %v1949
        %v2060 = vpack.c.b16 %v1952, %v1950
        %v2061 = vpack.c.b16 %v1955, %v1953
        %v2062 = vpack.c.b16 %v1956, %v1954
        %v2063 = vpack.c.b16 %v1959, %v1957
        %v2064 = vpack.c.b16 %v1960, %v1958
        %v2065 = vpack.c.b16 %v1963, %v1961
        %v2066 = vpack.c.b16 %v1964, %v1962
        %v2067 = vpack.c.b16 %v1967, %v1965
        %v2068 = vpack.c.b16 %v1968, %v1966
        %v2069 = vpack.c.b16 %v1971, %v1969
        %v2070 = vpack.c.b16 %v1972, %v1970
        %v2071 = vpack.c.b16 %v1975, %v1973
        %v2072 = vpack.c.b16 %v1976, %v1974
        %v2073 = vpack.c.b16 %v1979, %v1977
        %v2074 = vpack.c.b16 %v1980, %v1978
        %v2075 = vpack.c.b16 %v1983, %v1981
        %v2076 = vpack.c.b16 %v1984, %v1982
        %v2077 = vpack.c.b16 %v1987, %v1985
        %v2078 = vpack.c.b16 %v1988, %v1986
        %v2079 = vpack.c.b16 %v1991, %v1989
        %v2080 = vpack.c.b16 %v1992, %v1990
        %v2081 = vpack.c.b16 %v1995, %v1993
        %v2082 = vpack.c.b16 %v1996, %v1994
        %v2083 = vpack.c.b16 %v1999, %v1997
        %v2084 = vpack.c.b16 %v2000, %v1998
        %v2085 = vpack.c.b16 %v2003, %v2001
        %v2086 = vpack.c.b16 %v2004, %v2002
        %v2087 = vpack.c.b16 %v2007, %v2005
        %v2088 = vpack.c.b16 %v2008, %v2006
        %v2089 = vpack.c.b16 %v2011, %v2009
        %v2090 = vpack.c.b16 %v2012, %v2010
        %v2091 = vpack.c.b16 %v2015, %v2013
        %v2092 = vpack.c.b16 %v2016, %v2014
        %v2093 = vpack.c.b16 %v2019, %v2017
        %v2094 = vpack.c.b16 %v2020, %v2018
        %v2095 = vpack.c.b16 %v2023, %v2021
        %v2096 = vpack.c.b16 %v2024, %v2022
        %v2097 = vpack.c.b16 %v2027, %v2025
        %v2098 = vpack.c.b16 %v2028, %v2026
        %v2099 = vpack.c.b16 %v2031, %v2029
        %v2100 = vpack.c.b16 %v2032, %v2030
        %v2101 = vpack.c.b16 %v2035, %v2033
        %v2102 = vpack.c.b16 %v2036, %v2034
        %v2103 = vpack.c.b16 %v2039, %v2037
        %v2104 = vpack.c.b16 %v2040, %v2038
        %2169 = vmatprep.subr.bf16.mxu0 %v2056
        %2170 = vmatpush1.bf16.msra.mxu0 %v2055
        %2171 = vmatprep.subr.bf16.mxu0 %v2054
        %2172 = vmatpush1.bf16.msra.mxu0 %v2053
        %2173 = vmatprep.subr.bf16.mxu0 %v2052
        %2174 = vmatpush1.bf16.msra.mxu0 %v2051
        %2175 = vmatprep.subr.bf16.mxu0 %v2050
        %2176 = vmatpush1.bf16.msra.mxu0 %v2049
        %2177 = vmatprep.subr.bf16.mxu0 %v2048
        %2178 = vmatpush1.bf16.msra.mxu0 %v2047
        %2179 = vmatprep.subr.bf16.mxu0 %v2046
        %2180 = vmatpush1.bf16.msra.mxu0 %v2045
        %2181 = vmatprep.subr.bf16.mxu0 %v2044
        %2182 = vmatpush1.bf16.msra.mxu0 %v2043
        %2183 = vmatprep.subr.bf16.mxu0 %v2042
        %2184 = vmatpush1.bf16.msra.mxu0 %v2041
        %2185 = vmatprep.subr.bf16.mxu0 %v2072
        %2186 = vmatpush2.bf16.msra.mxu0 %v2071
        %2187 = vmatprep.subr.bf16.mxu0 %v2070
        %2188 = vmatpush2.bf16.msra.mxu0 %v2069
        %2189 = vmatprep.subr.bf16.mxu0 %v2068
        %2190 = vmatpush2.bf16.msra.mxu0 %v2067
        %2191 = vmatprep.subr.bf16.mxu0 %v2066
        %2192 = vmatpush2.bf16.msra.mxu0 %v2065
        %2193 = vmatprep.subr.bf16.mxu0 %v2064
        %2194 = vmatpush2.bf16.msra.mxu0 %v2063
        %2195 = vmatprep.subr.bf16.mxu0 %v2062
        %2196 = vmatpush2.bf16.msra.mxu0 %v2061
        %2197 = vmatprep.subr.bf16.mxu0 %v2060
        %2198 = vmatpush2.bf16.msra.mxu0 %v2059
        %2199 = vmatprep.subr.bf16.mxu0 %v2058
        %2200 = vmatpush2.bf16.msra.mxu0 %v2057
        %2201 = vmatprep.mubr.bf16.mxu0 %v1742
        %2202 = vmatmul.mubr.bf16.gmra.mxu0 %v1741
        %v2203 = vpop.f32.mrf.mxu0
        %v2204 = vadd.f32 %v1842, %v2203
        %v2205 = vpop.f32.mrf.mxu0
        %v2206 = vadd.f32 %v1846, %v2205
        %v2207 = vpop.f32.mrf.mxu0
        %v2208 = vadd.f32 %v1842, %v2207
        %v2209 = vpop.f32.mrf.mxu0
        %v2210 = vadd.f32 %v1846, %v2209
        %2211 = vmatprep.mubr.bf16.mxu0 %v1746
        %2212 = vmatmul.mubr.bf16.gmra.mxu0 %v1745
        %v2213 = vpop.f32.mrf.mxu0
        %v2214 = vadd.f32 %v1842, %v2213
        %v2215 = vpop.f32.mrf.mxu0
        %v2216 = vadd.f32 %v1846, %v2215
        %v2217 = vpop.f32.mrf.mxu0
        %v2218 = vadd.f32 %v1842, %v2217
        %v2219 = vpop.f32.mrf.mxu0
        %v2220 = vadd.f32 %v1846, %v2219
        %2221 = vmatprep.mubr.bf16.mxu0 %v1750
        %2222 = vmatmul.mubr.bf16.gmra.mxu0 %v1749
        %v2223 = vpop.f32.mrf.mxu0
        %v2224 = vadd.f32 %v1842, %v2223
        %v2225 = vpop.f32.mrf.mxu0
        %v2226 = vadd.f32 %v1846, %v2225
        %v2227 = vpop.f32.mrf.mxu0
        %v2228 = vadd.f32 %v1842, %v2227
        %v2229 = vpop.f32.mrf.mxu0
        %v2230 = vadd.f32 %v1846, %v2229
        %2231 = vmatprep.mubr.bf16.mxu0 %v1754
        %2232 = vmatmul.mubr.bf16.gmra.mxu0 %v1753
        %v2233 = vpop.f32.mrf.mxu0
        %v2234 = vadd.f32 %v1842, %v2233
        %v2235 = vpop.f32.mrf.mxu0
        %v2236 = vadd.f32 %v1846, %v2235
        %v2237 = vpop.f32.mrf.mxu0
        %v2238 = vadd.f32 %v1842, %v2237
        %v2239 = vpop.f32.mrf.mxu0
        %v2240 = vadd.f32 %v1846, %v2239
        %2241 = vmatprep.mubr.bf16.mxu0 %v1758
        %2242 = vmatmul.mubr.bf16.gmra.mxu0 %v1757
        %v2243 = vpop.f32.mrf.mxu0
        %v2244 = vadd.f32 %v1842, %v2243
        %v2245 = vpop.f32.mrf.mxu0
        %v2246 = vadd.f32 %v1846, %v2245
        %v2247 = vpop.f32.mrf.mxu0
        %v2248 = vadd.f32 %v1842, %v2247
        %v2249 = vpop.f32.mrf.mxu0
        %v2250 = vadd.f32 %v1846, %v2249
        %2251 = vmatprep.mubr.bf16.mxu0 %v1762
        %2252 = vmatmul.mubr.bf16.gmra.mxu0 %v1761
        %v2253 = vpop.f32.mrf.mxu0
        %v2254 = vadd.f32 %v1842, %v2253
        %v2255 = vpop.f32.mrf.mxu0
        %v2256 = vadd.f32 %v1846, %v2255
        %v2257 = vpop.f32.mrf.mxu0
        %v2258 = vadd.f32 %v1842, %v2257
        %v2259 = vpop.f32.mrf.mxu0
        %v2260 = vadd.f32 %v1846, %v2259
        %2261 = vmatprep.mubr.bf16.mxu0 %v1766
        %2262 = vmatmul.mubr.bf16.gmra.mxu0 %v1765
        %v2263 = vpop.f32.mrf.mxu0
        %v2264 = vadd.f32 %v1842, %v2263
        %v2265 = vpop.f32.mrf.mxu0
        %v2266 = vadd.f32 %v1846, %v2265
        %v2267 = vpop.f32.mrf.mxu0
        %v2268 = vadd.f32 %v1842, %v2267
        %v2269 = vpop.f32.mrf.mxu0
        %v2270 = vadd.f32 %v1846, %v2269
        %2271 = vmatprep.mubr.bf16.mxu0 %v1770
        %2272 = vmatmul.mubr.bf16.gmra.mxu0 %v1769
        %v2273 = vpop.f32.mrf.mxu0
        %v2274 = vadd.f32 %v1842, %v2273
        %v2275 = vpop.f32.mrf.mxu0
        %v2276 = vadd.f32 %v1846, %v2275
        %v2277 = vpop.f32.mrf.mxu0
        %v2278 = vadd.f32 %v1842, %v2277
        %v2279 = vpop.f32.mrf.mxu0
        %v2280 = vadd.f32 %v1846, %v2279
        %2281 = vdwg.mxu0
        %2282 = vmatprep.subr.bf16.mxu0 %v2088
        %2283 = vmatpush1.bf16.msra.mxu0 %v2087
        %2284 = vmatprep.subr.bf16.mxu0 %v2086
        %2285 = vmatpush1.bf16.msra.mxu0 %v2085
        %2286 = vmatprep.subr.bf16.mxu0 %v2084
        %2287 = vmatpush1.bf16.msra.mxu0 %v2083
        %2288 = vmatprep.subr.bf16.mxu0 %v2082
        %2289 = vmatpush1.bf16.msra.mxu0 %v2081
        %2290 = vmatprep.subr.bf16.mxu0 %v2080
        %2291 = vmatpush1.bf16.msra.mxu0 %v2079
        %2292 = vmatprep.subr.bf16.mxu0 %v2078
        %2293 = vmatpush1.bf16.msra.mxu0 %v2077
        %2294 = vmatprep.subr.bf16.mxu0 %v2076
        %2295 = vmatpush1.bf16.msra.mxu0 %v2075
        %2296 = vmatprep.subr.bf16.mxu0 %v2074
        %2297 = vmatpush1.bf16.msra.mxu0 %v2073
        %2298 = vmatprep.subr.bf16.mxu0 %v2104
        %2299 = vmatpush2.bf16.msra.mxu0 %v2103
        %2300 = vmatprep.subr.bf16.mxu0 %v2102
        %2301 = vmatpush2.bf16.msra.mxu0 %v2101
        %2302 = vmatprep.subr.bf16.mxu0 %v2100
        %2303 = vmatpush2.bf16.msra.mxu0 %v2099
        %2304 = vmatprep.subr.bf16.mxu0 %v2098
        %2305 = vmatpush2.bf16.msra.mxu0 %v2097
        %2306 = vmatprep.subr.bf16.mxu0 %v2096
        %2307 = vmatpush2.bf16.msra.mxu0 %v2095
        %2308 = vmatprep.subr.bf16.mxu0 %v2094
        %2309 = vmatpush2.bf16.msra.mxu0 %v2093
        %2310 = vmatprep.subr.bf16.mxu0 %v2092
        %2311 = vmatpush2.bf16.msra.mxu0 %v2091
        %2312 = vmatprep.subr.bf16.mxu0 %v2090
        %2313 = vmatpush2.bf16.msra.mxu0 %v2089
        %2314 = vmatprep.mubr.bf16.mxu0 %v1744
        %2315 = vmatmul.mubr.bf16.gmra.mxu0 %v1743
        %v2316 = vpop.f32.mrf.mxu0
        %v2317 = vadd.f32 %v2204, %v2316
        %v2318 = vpop.f32.mrf.mxu0
        %v2319 = vadd.f32 %v2206, %v2318
        %v2320 = vpop.f32.mrf.mxu0
        %v2321 = vadd.f32 %v2208, %v2320
        %v2322 = vpop.f32.mrf.mxu0
        %v2323 = vadd.f32 %v2210, %v2322
        %2324 = vmatprep.mubr.bf16.mxu0 %v1748
        %2325 = vmatmul.mubr.bf16.gmra.mxu0 %v1747
        %v2326 = vpop.f32.mrf.mxu0
        %v2327 = vadd.f32 %v2214, %v2326
        %v2328 = vpop.f32.mrf.mxu0
        %v2329 = vadd.f32 %v2216, %v2328
        %v2330 = vpop.f32.mrf.mxu0
        %v2331 = vadd.f32 %v2218, %v2330
        %v2332 = vpop.f32.mrf.mxu0
        %v2333 = vadd.f32 %v2220, %v2332
        %2334 = vmatprep.mubr.bf16.mxu0 %v1752
        %2335 = vmatmul.mubr.bf16.gmra.mxu0 %v1751
        %v2336 = vpop.f32.mrf.mxu0
        %v2337 = vadd.f32 %v2224, %v2336
        %v2338 = vpop.f32.mrf.mxu0
        %v2339 = vadd.f32 %v2226, %v2338
        %v2340 = vpop.f32.mrf.mxu0
        %v2341 = vadd.f32 %v2228, %v2340
        %v2342 = vpop.f32.mrf.mxu0
        %v2343 = vadd.f32 %v2230, %v2342
        %2344 = vmatprep.mubr.bf16.mxu0 %v1756
        %2345 = vmatmul.mubr.bf16.gmra.mxu0 %v1755
        %v2346 = vpop.f32.mrf.mxu0
        %v2347 = vadd.f32 %v2234, %v2346
        %v2348 = vpop.f32.mrf.mxu0
        %v2349 = vadd.f32 %v2236, %v2348
        %v2350 = vpop.f32.mrf.mxu0
        %v2351 = vadd.f32 %v2238, %v2350
        %v2352 = vpop.f32.mrf.mxu0
        %v2353 = vadd.f32 %v2240, %v2352
        %2354 = vmatprep.mubr.bf16.mxu0 %v1760
        %2355 = vmatmul.mubr.bf16.gmra.mxu0 %v1759
        %v2356 = vpop.f32.mrf.mxu0
        %v2357 = vadd.f32 %v2244, %v2356
        %v2358 = vpop.f32.mrf.mxu0
        %v2359 = vadd.f32 %v2246, %v2358
        %v2360 = vpop.f32.mrf.mxu0
        %v2361 = vadd.f32 %v2248, %v2360
        %v2362 = vpop.f32.mrf.mxu0
        %v2363 = vadd.f32 %v2250, %v2362
        %2364 = vmatprep.mubr.bf16.mxu0 %v1764
        %2365 = vmatmul.mubr.bf16.gmra.mxu0 %v1763
        %v2366 = vpop.f32.mrf.mxu0
        %v2367 = vadd.f32 %v2254, %v2366
        %v2368 = vpop.f32.mrf.mxu0
        %v2369 = vadd.f32 %v2256, %v2368
        %v2370 = vpop.f32.mrf.mxu0
        %v2371 = vadd.f32 %v2258, %v2370
        %v2372 = vpop.f32.mrf.mxu0
        %v2373 = vadd.f32 %v2260, %v2372
        %2374 = vmatprep.mubr.bf16.mxu0 %v1768
        %2375 = vmatmul.mubr.bf16.gmra.mxu0 %v1767
        %v2376 = vpop.f32.mrf.mxu0
        %v2377 = vadd.f32 %v2264, %v2376
        %v2378 = vpop.f32.mrf.mxu0
        %v2379 = vadd.f32 %v2266, %v2378
        %v2380 = vpop.f32.mrf.mxu0
        %v2381 = vadd.f32 %v2268, %v2380
        %v2382 = vpop.f32.mrf.mxu0
        %v2383 = vadd.f32 %v2270, %v2382
        %2384 = vmatprep.mubr.bf16.mxu0 %v1772
        %2385 = vmatmul.mubr.bf16.gmra.mxu0 %v1771
        %v2386 = vpop.f32.mrf.mxu0
        %v2387 = vadd.f32 %v2274, %v2386
        %v2388 = vpop.f32.mrf.mxu0
        %v2389 = vadd.f32 %v2276, %v2388
        %v2390 = vpop.f32.mrf.mxu0
        %v2391 = vadd.f32 %v2278, %v2390
        %v2392 = vpop.f32.mrf.mxu0
        %v2393 = vadd.f32 %v2280, %v2392
        %2394 = vdwg.mxu0
        %v2395 = vmax.f32 %v2317, 0.0
        %v2396 = vmax.f32 %v2319, 0.0
        %v2397 = vmax.f32 %v2321, 0.0
        %v2398 = vmax.f32 %v2323, 0.0
        %v2399 = vmax.f32 %v2327, 0.0
        %v2400 = vmax.f32 %v2329, 0.0
        %v2401 = vmax.f32 %v2331, 0.0
        %v2402 = vmax.f32 %v2333, 0.0
        %v2403 = vmax.f32 %v2337, 0.0
        %v2404 = vmax.f32 %v2339, 0.0
        %v2405 = vmax.f32 %v2341, 0.0
        %v2406 = vmax.f32 %v2343, 0.0
        %v2407 = vmax.f32 %v2347, 0.0
        %v2408 = vmax.f32 %v2349, 0.0
        %v2409 = vmax.f32 %v2351, 0.0
        %v2410 = vmax.f32 %v2353, 0.0
        %v2411 = vmax.f32 %v2357, 0.0
        %v2412 = vmax.f32 %v2359, 0.0
        %v2413 = vmax.f32 %v2361, 0.0
        %v2414 = vmax.f32 %v2363, 0.0
        %v2415 = vmax.f32 %v2367, 0.0
        %v2416 = vmax.f32 %v2369, 0.0
        %v2417 = vmax.f32 %v2371, 0.0
        %v2418 = vmax.f32 %v2373, 0.0
        %v2419 = vmax.f32 %v2377, 0.0
        %v2420 = vmax.f32 %v2379, 0.0
        %v2421 = vmax.f32 %v2381, 0.0
        %v2422 = vmax.f32 %v2383, 0.0
        %v2423 = vmax.f32 %v2387, 0.0
        %v2424 = vmax.f32 %v2389, 0.0
        %v2425 = vmax.f32 %v2391, 0.0
        %v2426 = vmax.f32 %v2393, 0.0
        %v2427 = vpack.c.bf16 %v2397, %v2395
        %v2428 = vpack.c.bf16 %v2398, %v2396
        %v2429 = vpack.c.bf16 %v2401, %v2399
        %v2430 = vpack.c.bf16 %v2402, %v2400
        %v2431 = vpack.c.bf16 %v2405, %v2403
        %v2432 = vpack.c.bf16 %v2406, %v2404
        %v2433 = vpack.c.bf16 %v2409, %v2407
        %v2434 = vpack.c.bf16 %v2410, %v2408
        %v2435 = vpack.c.bf16 %v2413, %v2411
        %v2436 = vpack.c.bf16 %v2414, %v2412
        %v2437 = vpack.c.bf16 %v2417, %v2415
        %v2438 = vpack.c.bf16 %v2418, %v2416
        %v2439 = vpack.c.bf16 %v2421, %v2419
        %v2440 = vpack.c.bf16 %v2422, %v2420
        %v2441 = vpack.c.bf16 %v2425, %v2423
        %v2442 = vpack.c.bf16 %v2426, %v2424
        %v2443 = vld [vmem:[#allocation10] sm:$0xf]
        %v2444 = vld [vmem:[#allocation10 + $0x4] sm:$0xf]
        %v2445 = vld [vmem:[#allocation10 + $0x8] sm:$0xf]
        %v2446 = vld [vmem:[#allocation10 + $0xc] sm:$0xf]
        %v2447 = vld [vmem:[#allocation10 + $0x10] sm:$0xf]
        %v2448 = vld [vmem:[#allocation10 + $0x14] sm:$0xf]
        %v2449 = vld [vmem:[#allocation10 + $0x18] sm:$0xf]
        %v2450 = vld [vmem:[#allocation10 + $0x1c] sm:$0xf]
        %v2451 = vld [vmem:[#allocation10 + $0x20] sm:$0xf]
        %v2452 = vld [vmem:[#allocation10 + $0x24] sm:$0xf]
        %v2453 = vld [vmem:[#allocation10 + $0x28] sm:$0xf]
        %v2454 = vld [vmem:[#allocation10 + $0x2c] sm:$0xf]
        %v2455 = vld [vmem:[#allocation10 + $0x30] sm:$0xf]
        %v2456 = vld [vmem:[#allocation10 + $0x34] sm:$0xf]
        %v2457 = vld [vmem:[#allocation10 + $0x38] sm:$0xf]
        %v2458 = vld [vmem:[#allocation10 + $0x3c] sm:$0xf]
        %v2459 = vld [vmem:[#allocation10 + $0x40] sm:$0xf]
        %v2460 = vld [vmem:[#allocation10 + $0x44] sm:$0xf]
        %v2461 = vld [vmem:[#allocation10 + $0x48] sm:$0xf]
        %v2462 = vld [vmem:[#allocation10 + $0x4c] sm:$0xf]
        %v2463 = vld [vmem:[#allocation10 + $0x50] sm:$0xf]
        %v2464 = vld [vmem:[#allocation10 + $0x54] sm:$0xf]
        %v2465 = vld [vmem:[#allocation10 + $0x58] sm:$0xf]
        %v2466 = vld [vmem:[#allocation10 + $0x5c] sm:$0xf]
        %v2467 = vld [vmem:[#allocation10 + $0x60] sm:$0xf]
        %v2468 = vld [vmem:[#allocation10 + $0x64] sm:$0xf]
        %v2469 = vld [vmem:[#allocation10 + $0x68] sm:$0xf]
        %v2470 = vld [vmem:[#allocation10 + $0x6c] sm:$0xf]
        %v2471 = vld [vmem:[#allocation10 + $0x70] sm:$0xf]
        %v2472 = vld [vmem:[#allocation10 + $0x74] sm:$0xf]
        %v2473 = vld [vmem:[#allocation10 + $0x78] sm:$0xf]
        %v2474 = vld [vmem:[#allocation10 + $0x7c] sm:$0xf]
        %v2475 = vld [vmem:[%s6] sm:$0x1]
        %v2477 = vlaneseq
        %v2478 = vshrl.u32 %v2477, 7
        %v2479 = vsub.s32 0, %v2478
        %v2480 = vrot.slane %v2475, %v2479
        %v2514 = vunpack.c.l.b16 %v2443
        %v2515 = vunpack.c.l.b16 %v2444
        %v2516 = vunpack.c.l.b16 %v2445
        %v2517 = vunpack.c.l.b16 %v2446
        %v2518 = vunpack.c.l.b16 %v2447
        %v2519 = vunpack.c.l.b16 %v2448
        %v2520 = vunpack.c.l.b16 %v2449
        %v2521 = vunpack.c.l.b16 %v2450
        %v2522 = vunpack.c.l.b16 %v2451
        %v2523 = vunpack.c.l.b16 %v2452
        %v2524 = vunpack.c.l.b16 %v2453
        %v2525 = vunpack.c.l.b16 %v2454
        %v2526 = vunpack.c.l.b16 %v2455
        %v2527 = vunpack.c.l.b16 %v2456
        %v2528 = vunpack.c.l.b16 %v2457
        %v2529 = vunpack.c.l.b16 %v2458
        %v2530 = vunpack.c.l.b16 %v2459
        %v2531 = vunpack.c.l.b16 %v2460
        %v2532 = vunpack.c.l.b16 %v2461
        %v2533 = vunpack.c.l.b16 %v2462
        %v2534 = vunpack.c.l.b16 %v2463
        %v2535 = vunpack.c.l.b16 %v2464
        %v2536 = vunpack.c.l.b16 %v2465
        %v2537 = vunpack.c.l.b16 %v2466
        %v2538 = vunpack.c.l.b16 %v2467
        %v2539 = vunpack.c.l.b16 %v2468
        %v2540 = vunpack.c.l.b16 %v2469
        %v2541 = vunpack.c.l.b16 %v2470
        %v2542 = vunpack.c.l.b16 %v2471
        %v2543 = vunpack.c.l.b16 %v2472
        %v2544 = vunpack.c.l.b16 %v2473
        %v2545 = vunpack.c.l.b16 %v2474
        %v2546 = vpack.c.b16 %v2515, %v2514
        %v2547 = vpack.c.b16 %v2517, %v2516
        %v2548 = vpack.c.b16 %v2519, %v2518
        %v2549 = vpack.c.b16 %v2521, %v2520
        %v2550 = vpack.c.b16 %v2523, %v2522
        %v2551 = vpack.c.b16 %v2525, %v2524
        %v2552 = vpack.c.b16 %v2527, %v2526
        %v2553 = vpack.c.b16 %v2529, %v2528
        %v2554 = vpack.c.b16 %v2531, %v2530
        %v2555 = vpack.c.b16 %v2533, %v2532
        %v2556 = vpack.c.b16 %v2535, %v2534
        %v2557 = vpack.c.b16 %v2537, %v2536
        %v2558 = vpack.c.b16 %v2539, %v2538
        %v2559 = vpack.c.b16 %v2541, %v2540
        %v2560 = vpack.c.b16 %v2543, %v2542
        %v2561 = vpack.c.b16 %v2545, %v2544
        %2578 = vmatprep.subr.bf16.mxu0 0
        %2579 = vmatpush1.bf16.msra.mxu0 %v2553
        %2580 = vmatprep.subr.bf16.mxu0 0
        %2581 = vmatpush1.bf16.msra.mxu0 %v2552
        %2582 = vmatprep.subr.bf16.mxu0 0
        %2583 = vmatpush1.bf16.msra.mxu0 %v2551
        %2584 = vmatprep.subr.bf16.mxu0 0
        %2585 = vmatpush1.bf16.msra.mxu0 %v2550
        %2586 = vmatprep.subr.bf16.mxu0 0
        %2587 = vmatpush1.bf16.msra.mxu0 %v2549
        %2588 = vmatprep.subr.bf16.mxu0 0
        %2589 = vmatpush1.bf16.msra.mxu0 %v2548
        %2590 = vmatprep.subr.bf16.mxu0 0
        %2591 = vmatpush1.bf16.msra.mxu0 %v2547
        %2592 = vmatprep.subr.bf16.mxu0 0
        %2593 = vmatpush1.bf16.msra.mxu0 %v2546
        %2594 = vmatprep.subr.bf16.mxu0 0
        %2595 = vmatpush2.bf16.msra.mxu0 %v2561
        %2596 = vmatprep.subr.bf16.mxu0 0
        %2597 = vmatpush2.bf16.msra.mxu0 %v2560
        %2598 = vmatprep.subr.bf16.mxu0 0
        %2599 = vmatpush2.bf16.msra.mxu0 %v2559
        %2600 = vmatprep.subr.bf16.mxu0 0
        %2601 = vmatpush2.bf16.msra.mxu0 %v2558
        %2602 = vmatprep.subr.bf16.mxu0 0
        %2603 = vmatpush2.bf16.msra.mxu0 %v2557
        %2604 = vmatprep.subr.bf16.mxu0 0
        %2605 = vmatpush2.bf16.msra.mxu0 %v2556
        %2606 = vmatprep.subr.bf16.mxu0 0
        %2607 = vmatpush2.bf16.msra.mxu0 %v2555
        %2608 = vmatprep.subr.bf16.mxu0 0
        %2609 = vmatpush2.bf16.msra.mxu0 %v2554
        %2610 = vmatprep.mubr.bf16.mxu0 %v2428
        %2611 = vmatmul.mubr.bf16.gmra.mxu0 %v2427
        %v2612 = vpop.f32.mrf.mxu0
        %v2613 = vadd.f32 %v2480, %v2612
        %v2614 = vpop.f32.mrf.mxu0
        %v2615 = vpop.f32.mrf.mxu0
        %v2616 = vadd.f32 %v2480, %v2615
        %v2617 = vpop.f32.mrf.mxu0
        %2618 = vmatprep.mubr.bf16.mxu0 %v2430
        %2619 = vmatmul.mubr.bf16.gmra.mxu0 %v2429
        %v2620 = vpop.f32.mrf.mxu0
        %v2621 = vadd.f32 %v2480, %v2620
        %v2622 = vpop.f32.mrf.mxu0
        %v2623 = vpop.f32.mrf.mxu0
        %v2624 = vadd.f32 %v2480, %v2623
        %v2625 = vpop.f32.mrf.mxu0
        %2626 = vmatprep.mubr.bf16.mxu0 %v2432
        %2627 = vmatmul.mubr.bf16.gmra.mxu0 %v2431
        %v2628 = vpop.f32.mrf.mxu0
        %v2629 = vadd.f32 %v2480, %v2628
        %v2630 = vpop.f32.mrf.mxu0
        %v2631 = vpop.f32.mrf.mxu0
        %v2632 = vadd.f32 %v2480, %v2631
        %v2633 = vpop.f32.mrf.mxu0
        %2634 = vmatprep.mubr.bf16.mxu0 %v2434
        %2635 = vmatmul.mubr.bf16.gmra.mxu0 %v2433
        %v2636 = vpop.f32.mrf.mxu0
        %v2637 = vadd.f32 %v2480, %v2636
        %v2638 = vpop.f32.mrf.mxu0
        %v2639 = vpop.f32.mrf.mxu0
        %v2640 = vadd.f32 %v2480, %v2639
        %v2641 = vpop.f32.mrf.mxu0
        %2642 = vmatprep.mubr.bf16.mxu0 %v2436
        %2643 = vmatmul.mubr.bf16.gmra.mxu0 %v2435
        %v2644 = vpop.f32.mrf.mxu0
        %v2645 = vadd.f32 %v2480, %v2644
        %v2646 = vpop.f32.mrf.mxu0
        %v2647 = vpop.f32.mrf.mxu0
        %v2648 = vadd.f32 %v2480, %v2647
        %v2649 = vpop.f32.mrf.mxu0
        %2650 = vmatprep.mubr.bf16.mxu0 %v2438
        %2651 = vmatmul.mubr.bf16.gmra.mxu0 %v2437
        %v2652 = vpop.f32.mrf.mxu0
        %v2653 = vadd.f32 %v2480, %v2652
        %v2654 = vpop.f32.mrf.mxu0
        %v2655 = vpop.f32.mrf.mxu0
        %v2656 = vadd.f32 %v2480, %v2655
        %v2657 = vpop.f32.mrf.mxu0
        %2658 = vmatprep.mubr.bf16.mxu0 %v2440
        %2659 = vmatmul.mubr.bf16.gmra.mxu0 %v2439
        %v2660 = vpop.f32.mrf.mxu0
        %v2661 = vadd.f32 %v2480, %v2660
        %v2662 = vpop.f32.mrf.mxu0
        %v2663 = vpop.f32.mrf.mxu0
        %v2664 = vadd.f32 %v2480, %v2663
        %v2665 = vpop.f32.mrf.mxu0
        %2666 = vmatprep.mubr.bf16.mxu0 %v2442
        %2667 = vmatmul.mubr.bf16.gmra.mxu0 %v2441
        %v2668 = vpop.f32.mrf.mxu0
        %v2669 = vadd.f32 %v2480, %v2668
        %v2670 = vpop.f32.mrf.mxu0
        %v2671 = vpop.f32.mrf.mxu0
        %v2672 = vadd.f32 %v2480, %v2671
        %v2673 = vpop.f32.mrf.mxu0
        %2674 = vdwg.mxu0
        %2675 = vst [vmem:[%s528] sm:$0xff] %v2613
        %2676 = vst [vmem:[%s528 + $0x8] sm:$0xff] %v2616
        %2677 = vst [vmem:[%s528 + $0x10] sm:$0xff] %v2621
        %2678 = vst [vmem:[%s528 + $0x18] sm:$0xff] %v2624
        %2679 = vst [vmem:[%s528 + $0x20] sm:$0xff] %v2629
        %2680 = vst [vmem:[%s528 + $0x28] sm:$0xff] %v2632
        %2681 = vst [vmem:[%s528 + $0x30] sm:$0xff] %v2637
        %2682 = vst [vmem:[%s528 + $0x38] sm:$0xff] %v2640
        %2683 = vst [vmem:[%s528 + $0x40] sm:$0xff] %v2645
        %2684 = vst [vmem:[%s528 + $0x48] sm:$0xff] %v2648
        %2685 = vst [vmem:[%s528 + $0x50] sm:$0xff] %v2653
        %2686 = vst [vmem:[%s528 + $0x58] sm:$0xff] %v2656
        %2687 = vst [vmem:[%s528 + $0x60] sm:$0xff] %v2661
        %2688 = vst [vmem:[%s528 + $0x68] sm:$0xff] %v2664
        %2689 = vst [vmem:[%s528 + $0x70] sm:$0xff] %v2669
        %2690 = vst [vmem:[%s528 + $0x78] sm:$0xff] %v2672
        %v2691 = vpack.c.bf16 %v2616, %v2613
        %v2692 = vpack.c.bf16 %v2624, %v2621
        %v2693 = vpack.c.bf16 %v2632, %v2629
        %v2694 = vpack.c.bf16 %v2640, %v2637
        %v2695 = vpack.c.bf16 %v2648, %v2645
        %v2696 = vpack.c.bf16 %v2656, %v2653
        %v2697 = vpack.c.bf16 %v2664, %v2661
        %v2698 = vpack.c.bf16 %v2672, %v2669
        %v2699 = vld [vmem:[#allocation11] sm:$0xf]
        %v2700 = vld [vmem:[#allocation11 + $0x4] sm:$0xf]
        %v2701 = vld [vmem:[#allocation11 + $0x8] sm:$0xf]
        %v2702 = vld [vmem:[#allocation11 + $0xc] sm:$0xf]
        %v2703 = vld [vmem:[#allocation11 + $0x10] sm:$0xf]
        %v2704 = vld [vmem:[#allocation11 + $0x14] sm:$0xf]
        %v2705 = vld [vmem:[#allocation11 + $0x18] sm:$0xf]
        %v2706 = vld [vmem:[#allocation11 + $0x1c] sm:$0xf]
        %v2707 = vld [vmem:[#allocation11 + $0x20] sm:$0xf]
        %v2708 = vld [vmem:[#allocation11 + $0x24] sm:$0xf]
        %v2709 = vld [vmem:[#allocation11 + $0x28] sm:$0xf]
        %v2710 = vld [vmem:[#allocation11 + $0x2c] sm:$0xf]
        %v2711 = vld [vmem:[#allocation11 + $0x30] sm:$0xf]
        %v2712 = vld [vmem:[#allocation11 + $0x34] sm:$0xf]
        %v2713 = vld [vmem:[#allocation11 + $0x38] sm:$0xf]
        %v2714 = vld [vmem:[#allocation11 + $0x3c] sm:$0xf]
        %v2715 = vld [vmem:[%s8] sm:$0x1]
        %v2717 = vlaneseq
        %v2718 = vshrl.u32 %v2717, 7
        %v2719 = vsub.s32 0, %v2718
        %v2720 = vrot.slane %v2715, %v2719
        %v2738 = vunpack.c.l.b16 %v2699
        %v2739 = vunpack.c.l.b16 %v2700
        %v2740 = vunpack.c.l.b16 %v2701
        %v2741 = vunpack.c.l.b16 %v2702
        %v2742 = vunpack.c.l.b16 %v2703
        %v2743 = vunpack.c.l.b16 %v2704
        %v2744 = vunpack.c.l.b16 %v2705
        %v2745 = vunpack.c.l.b16 %v2706
        %v2746 = vunpack.c.l.b16 %v2707
        %v2747 = vunpack.c.l.b16 %v2708
        %v2748 = vunpack.c.l.b16 %v2709
        %v2749 = vunpack.c.l.b16 %v2710
        %v2750 = vunpack.c.l.b16 %v2711
        %v2751 = vunpack.c.l.b16 %v2712
        %v2752 = vunpack.c.l.b16 %v2713
        %v2753 = vunpack.c.l.b16 %v2714
        %v2754 = vpack.c.b16 %v2739, %v2738
        %v2755 = vpack.c.b16 %v2741, %v2740
        %v2756 = vpack.c.b16 %v2743, %v2742
        %v2757 = vpack.c.b16 %v2745, %v2744
        %v2758 = vpack.c.b16 %v2747, %v2746
        %v2759 = vpack.c.b16 %v2749, %v2748
        %v2760 = vpack.c.b16 %v2751, %v2750
        %v2761 = vpack.c.b16 %v2753, %v2752
        %2770 = vmatprep.subr.bf16.mxu0 0
        %2771 = vmatpush1.bf16.msra.mxu0 %v2761
        %2772 = vmatprep.subr.bf16.mxu0 0
        %2773 = vmatpush1.bf16.msra.mxu0 %v2760
        %2774 = vmatprep.subr.bf16.mxu0 0
        %2775 = vmatpush1.bf16.msra.mxu0 %v2759
        %2776 = vmatprep.subr.bf16.mxu0 0
        %2777 = vmatpush1.bf16.msra.mxu0 %v2758
        %2778 = vmatprep.subr.bf16.mxu0 0
        %2779 = vmatpush1.bf16.msra.mxu0 %v2757
        %2780 = vmatprep.subr.bf16.mxu0 0
        %2781 = vmatpush1.bf16.msra.mxu0 %v2756
        %2782 = vmatprep.subr.bf16.mxu0 0
        %2783 = vmatpush1.bf16.msra.mxu0 %v2755
        %2784 = vmatprep.subr.bf16.mxu0 0
        %2785 = vmatpush1.bf16.msra.mxu0 %v2754
        %2786 = vmatprep.subr.bf16.mxu0 0
        %2787 = vmatpush2.bf16.msra.mxu0 0
        %2788 = vmatprep.subr.bf16.mxu0 0
        %2789 = vmatpush2.bf16.msra.mxu0 0
        %2790 = vmatprep.subr.bf16.mxu0 0
        %2791 = vmatpush2.bf16.msra.mxu0 0
        %2792 = vmatprep.subr.bf16.mxu0 0
        %2793 = vmatpush2.bf16.msra.mxu0 0
        %2794 = vmatprep.subr.bf16.mxu0 0
        %2795 = vmatpush2.bf16.msra.mxu0 0
        %2796 = vmatprep.subr.bf16.mxu0 0
        %2797 = vmatpush2.bf16.msra.mxu0 0
        %2798 = vmatprep.subr.bf16.mxu0 0
        %2799 = vmatpush2.bf16.msra.mxu0 0
        %2800 = vmatprep.subr.bf16.mxu0 0
        %2801 = vmatpush2.bf16.msra.mxu0 0
        %2802 = vmatprep.mubr.bf16.mxu0 0
        %2803 = vmatmul.mubr.bf16.gmra.mxu0 %v2691
        %v2804 = vpop.f32.mrf.mxu0
        %v2805 = vadd.f32 %v2720, %v2804
        %v2806 = vpop.f32.mrf.mxu0
        %v2807 = vpop.f32.mrf.mxu0
        %v2808 = vadd.f32 %v2720, %v2807
        %v2809 = vpop.f32.mrf.mxu0
        %2810 = vmatprep.mubr.bf16.mxu0 0
        %2811 = vmatmul.mubr.bf16.gmra.mxu0 %v2692
        %v2812 = vpop.f32.mrf.mxu0
        %v2813 = vadd.f32 %v2720, %v2812
        %v2814 = vpop.f32.mrf.mxu0
        %v2815 = vpop.f32.mrf.mxu0
        %v2816 = vadd.f32 %v2720, %v2815
        %v2817 = vpop.f32.mrf.mxu0
        %2818 = vmatprep.mubr.bf16.mxu0 0
        %2819 = vmatmul.mubr.bf16.gmra.mxu0 %v2693
        %v2820 = vpop.f32.mrf.mxu0
        %v2821 = vadd.f32 %v2720, %v2820
        %v2822 = vpop.f32.mrf.mxu0
        %v2823 = vpop.f32.mrf.mxu0
        %v2824 = vadd.f32 %v2720, %v2823
        %v2825 = vpop.f32.mrf.mxu0
        %2826 = vmatprep.mubr.bf16.mxu0 0
        %2827 = vmatmul.mubr.bf16.gmra.mxu0 %v2694
        %v2828 = vpop.f32.mrf.mxu0
        %v2829 = vadd.f32 %v2720, %v2828
        %v2830 = vpop.f32.mrf.mxu0
        %v2831 = vpop.f32.mrf.mxu0
        %v2832 = vadd.f32 %v2720, %v2831
        %v2833 = vpop.f32.mrf.mxu0
        %2834 = vmatprep.mubr.bf16.mxu0 0
        %2835 = vmatmul.mubr.bf16.gmra.mxu0 %v2695
        %v2836 = vpop.f32.mrf.mxu0
        %v2837 = vadd.f32 %v2720, %v2836
        %v2838 = vpop.f32.mrf.mxu0
        %v2839 = vpop.f32.mrf.mxu0
        %v2840 = vadd.f32 %v2720, %v2839
        %v2841 = vpop.f32.mrf.mxu0
        %2842 = vmatprep.mubr.bf16.mxu0 0
        %2843 = vmatmul.mubr.bf16.gmra.mxu0 %v2696
        %v2844 = vpop.f32.mrf.mxu0
        %v2845 = vadd.f32 %v2720, %v2844
        %v2846 = vpop.f32.mrf.mxu0
        %v2847 = vpop.f32.mrf.mxu0
        %v2848 = vadd.f32 %v2720, %v2847
        %v2849 = vpop.f32.mrf.mxu0
        %2850 = vmatprep.mubr.bf16.mxu0 0
        %2851 = vmatmul.mubr.bf16.gmra.mxu0 %v2697
        %v2852 = vpop.f32.mrf.mxu0
        %v2853 = vadd.f32 %v2720, %v2852
        %v2854 = vpop.f32.mrf.mxu0
        %v2855 = vpop.f32.mrf.mxu0
        %v2856 = vadd.f32 %v2720, %v2855
        %v2857 = vpop.f32.mrf.mxu0
        %2858 = vmatprep.mubr.bf16.mxu0 0
        %2859 = vmatmul.mubr.bf16.gmra.mxu0 %v2698
        %v2860 = vpop.f32.mrf.mxu0
        %v2861 = vadd.f32 %v2720, %v2860
        %v2862 = vpop.f32.mrf.mxu0
        %v2863 = vpop.f32.mrf.mxu0
        %v2864 = vadd.f32 %v2720, %v2863
        %v2865 = vpop.f32.mrf.mxu0
        %2866 = vdwg.mxu0
        %v2867 = vmax.f32 %v2805, 0.0
        %v2868 = vmax.f32 %v2808, 0.0
        %v2869 = vmax.f32 %v2813, 0.0
        %v2870 = vmax.f32 %v2816, 0.0
        %v2871 = vmax.f32 %v2821, 0.0
        %v2872 = vmax.f32 %v2824, 0.0
        %v2873 = vmax.f32 %v2829, 0.0
        %v2874 = vmax.f32 %v2832, 0.0
        %v2875 = vmax.f32 %v2837, 0.0
        %v2876 = vmax.f32 %v2840, 0.0
        %v2877 = vmax.f32 %v2845, 0.0
        %v2878 = vmax.f32 %v2848, 0.0
        %v2879 = vmax.f32 %v2853, 0.0
        %v2880 = vmax.f32 %v2856, 0.0
        %v2881 = vmax.f32 %v2861, 0.0
        %v2882 = vmax.f32 %v2864, 0.0
        %v2883 = vpack.c.bf16 %v2868, %v2867
        %v2884 = vpack.c.bf16 %v2870, %v2869
        %v2885 = vpack.c.bf16 %v2872, %v2871
        %v2886 = vpack.c.bf16 %v2874, %v2873
        %v2887 = vpack.c.bf16 %v2876, %v2875
        %v2888 = vpack.c.bf16 %v2878, %v2877
        %v2889 = vpack.c.bf16 %v2880, %v2879
        %v2890 = vpack.c.bf16 %v2882, %v2881
        %v2891 = vld [vmem:[#allocation13] sm:$0xf]
        %v2892 = vld [vmem:[#allocation13 + $0x4] sm:$0xf]
        %v2893 = vld [vmem:[#allocation13 + $0x8] sm:$0xf]
        %v2894 = vld [vmem:[#allocation13 + $0xc] sm:$0xf]
        %v2895 = vld [vmem:[#allocation13 + $0x10] sm:$0xf]
        %v2896 = vld [vmem:[#allocation13 + $0x14] sm:$0xf]
        %v2897 = vld [vmem:[#allocation13 + $0x18] sm:$0xf]
        %v2898 = vld [vmem:[#allocation13 + $0x1c] sm:$0xf]
        %v2899 = vld [vmem:[#allocation13 + $0x20] sm:$0xf]
        %v2900 = vld [vmem:[#allocation13 + $0x24] sm:$0xf]
        %v2901 = vld [vmem:[#allocation13 + $0x28] sm:$0xf]
        %v2902 = vld [vmem:[#allocation13 + $0x2c] sm:$0xf]
        %v2903 = vld [vmem:[#allocation13 + $0x30] sm:$0xf]
        %v2904 = vld [vmem:[#allocation13 + $0x34] sm:$0xf]
        %v2905 = vld [vmem:[#allocation13 + $0x38] sm:$0xf]
        %v2906 = vld [vmem:[#allocation13 + $0x3c] sm:$0xf]
        %v2907 = vld [vmem:[%s10] sm:$0x1]
        %v2909 = vlaneseq
        %v2910 = vshrl.u32 %v2909, 7
        %v2911 = vsub.s32 0, %v2910
        %v2912 = vrot.slane %v2907, %v2911
        %v2930 = vunpack.c.l.b16 %v2891
        %v2931 = vunpack.c.l.b16 %v2892
        %v2932 = vunpack.c.l.b16 %v2893
        %v2933 = vunpack.c.l.b16 %v2894
        %v2934 = vunpack.c.l.b16 %v2895
        %v2935 = vunpack.c.l.b16 %v2896
        %v2936 = vunpack.c.l.b16 %v2897
        %v2937 = vunpack.c.l.b16 %v2898
        %v2938 = vunpack.c.l.b16 %v2899
        %v2939 = vunpack.c.l.b16 %v2900
        %v2940 = vunpack.c.l.b16 %v2901
        %v2941 = vunpack.c.l.b16 %v2902
        %v2942 = vunpack.c.l.b16 %v2903
        %v2943 = vunpack.c.l.b16 %v2904
        %v2944 = vunpack.c.l.b16 %v2905
        %v2945 = vunpack.c.l.b16 %v2906
        %v2946 = vpack.c.b16 %v2931, %v2930
        %v2947 = vpack.c.b16 %v2933, %v2932
        %v2948 = vpack.c.b16 %v2935, %v2934
        %v2949 = vpack.c.b16 %v2937, %v2936
        %v2950 = vpack.c.b16 %v2939, %v2938
        %v2951 = vpack.c.b16 %v2941, %v2940
        %v2952 = vpack.c.b16 %v2943, %v2942
        %v2953 = vpack.c.b16 %v2945, %v2944
        %2962 = vmatprep.subr.bf16.mxu0 0
        %2963 = vmatpush1.bf16.msra.mxu0 %v2953
        %2964 = vmatprep.subr.bf16.mxu0 0
        %2965 = vmatpush1.bf16.msra.mxu0 %v2952
        %2966 = vmatprep.subr.bf16.mxu0 0
        %2967 = vmatpush1.bf16.msra.mxu0 %v2951
        %2968 = vmatprep.subr.bf16.mxu0 0
        %2969 = vmatpush1.bf16.msra.mxu0 %v2950
        %2970 = vmatprep.subr.bf16.mxu0 0
        %2971 = vmatpush1.bf16.msra.mxu0 %v2949
        %2972 = vmatprep.subr.bf16.mxu0 0
        %2973 = vmatpush1.bf16.msra.mxu0 %v2948
        %2974 = vmatprep.subr.bf16.mxu0 0
        %2975 = vmatpush1.bf16.msra.mxu0 %v2947
        %2976 = vmatprep.subr.bf16.mxu0 0
        %2977 = vmatpush1.bf16.msra.mxu0 %v2946
        %2978 = vmatprep.subr.bf16.mxu0 0
        %2979 = vmatpush2.bf16.msra.mxu0 0
        %2980 = vmatprep.subr.bf16.mxu0 0
        %2981 = vmatpush2.bf16.msra.mxu0 0
        %2982 = vmatprep.subr.bf16.mxu0 0
        %2983 = vmatpush2.bf16.msra.mxu0 0
        %2984 = vmatprep.subr.bf16.mxu0 0
        %2985 = vmatpush2.bf16.msra.mxu0 0
        %2986 = vmatprep.subr.bf16.mxu0 0
        %2987 = vmatpush2.bf16.msra.mxu0 0
        %2988 = vmatprep.subr.bf16.mxu0 0
        %2989 = vmatpush2.bf16.msra.mxu0 0
        %2990 = vmatprep.subr.bf16.mxu0 0
        %2991 = vmatpush2.bf16.msra.mxu0 0
        %2992 = vmatprep.subr.bf16.mxu0 0
        %2993 = vmatpush2.bf16.msra.mxu0 0
        %2994 = vmatprep.mubr.bf16.mxu0 0
        %2995 = vmatmul.mubr.bf16.gmra.mxu0 %v2883
        %v2996 = vpop.f32.mrf.mxu0
        %v2997 = vadd.f32 %v2912, %v2996
        %v2998 = vpop.f32.mrf.mxu0
        %v2999 = vpop.f32.mrf.mxu0
        %v3000 = vadd.f32 %v2912, %v2999
        %v3001 = vpop.f32.mrf.mxu0
        %3002 = vmatprep.mubr.bf16.mxu0 0
        %3003 = vmatmul.mubr.bf16.gmra.mxu0 %v2884
        %v3004 = vpop.f32.mrf.mxu0
        %v3005 = vadd.f32 %v2912, %v3004
        %v3006 = vpop.f32.mrf.mxu0
        %v3007 = vpop.f32.mrf.mxu0
        %v3008 = vadd.f32 %v2912, %v3007
        %v3009 = vpop.f32.mrf.mxu0
        %3010 = vmatprep.mubr.bf16.mxu0 0
        %3011 = vmatmul.mubr.bf16.gmra.mxu0 %v2885
        %v3012 = vpop.f32.mrf.mxu0
        %v3013 = vadd.f32 %v2912, %v3012
        %v3014 = vpop.f32.mrf.mxu0
        %v3015 = vpop.f32.mrf.mxu0
        %v3016 = vadd.f32 %v2912, %v3015
        %v3017 = vpop.f32.mrf.mxu0
        %3018 = vmatprep.mubr.bf16.mxu0 0
        %3019 = vmatmul.mubr.bf16.gmra.mxu0 %v2886
        %v3020 = vpop.f32.mrf.mxu0
        %v3021 = vadd.f32 %v2912, %v3020
        %v3022 = vpop.f32.mrf.mxu0
        %v3023 = vpop.f32.mrf.mxu0
        %v3024 = vadd.f32 %v2912, %v3023
        %v3025 = vpop.f32.mrf.mxu0
        %3026 = vmatprep.mubr.bf16.mxu0 0
        %3027 = vmatmul.mubr.bf16.gmra.mxu0 %v2887
        %v3028 = vpop.f32.mrf.mxu0
        %v3029 = vadd.f32 %v2912, %v3028
        %v3030 = vpop.f32.mrf.mxu0
        %v3031 = vpop.f32.mrf.mxu0
        %v3032 = vadd.f32 %v2912, %v3031
        %v3033 = vpop.f32.mrf.mxu0
        %3034 = vmatprep.mubr.bf16.mxu0 0
        %3035 = vmatmul.mubr.bf16.gmra.mxu0 %v2888
        %v3036 = vpop.f32.mrf.mxu0
        %v3037 = vadd.f32 %v2912, %v3036
        %v3038 = vpop.f32.mrf.mxu0
        %v3039 = vpop.f32.mrf.mxu0
        %v3040 = vadd.f32 %v2912, %v3039
        %v3041 = vpop.f32.mrf.mxu0
        %3042 = vmatprep.mubr.bf16.mxu0 0
        %3043 = vmatmul.mubr.bf16.gmra.mxu0 %v2889
        %v3044 = vpop.f32.mrf.mxu0
        %v3045 = vadd.f32 %v2912, %v3044
        %v3046 = vpop.f32.mrf.mxu0
        %v3047 = vpop.f32.mrf.mxu0
        %v3048 = vadd.f32 %v2912, %v3047
        %v3049 = vpop.f32.mrf.mxu0
        %3050 = vmatprep.mubr.bf16.mxu0 0
        %3051 = vmatmul.mubr.bf16.gmra.mxu0 %v2890
        %v3052 = vpop.f32.mrf.mxu0
        %v3053 = vadd.f32 %v2912, %v3052
        %v3054 = vpop.f32.mrf.mxu0
        %v3055 = vpop.f32.mrf.mxu0
        %v3056 = vadd.f32 %v2912, %v3055
        %v3057 = vpop.f32.mrf.mxu0
        %3058 = vdwg.mxu0
        %3059 = vst [vmem:[%s535] sm:$0xff] %v2997
        %3060 = vst [vmem:[%s535 + $0x8] sm:$0xff] %v3000
        %3061 = vst [vmem:[%s535 + $0x10] sm:$0xff] %v3005
        %3062 = vst [vmem:[%s535 + $0x18] sm:$0xff] %v3008
        %3063 = vst [vmem:[%s535 + $0x20] sm:$0xff] %v3013
        %3064 = vst [vmem:[%s535 + $0x28] sm:$0xff] %v3016
        %3065 = vst [vmem:[%s535 + $0x30] sm:$0xff] %v3021
        %3066 = vst [vmem:[%s535 + $0x38] sm:$0xff] %v3024
        %3067 = vst [vmem:[%s535 + $0x40] sm:$0xff] %v3029
        %3068 = vst [vmem:[%s535 + $0x48] sm:$0xff] %v3032
        %3069 = vst [vmem:[%s535 + $0x50] sm:$0xff] %v3037
        %3070 = vst [vmem:[%s535 + $0x58] sm:$0xff] %v3040
        %3071 = vst [vmem:[%s535 + $0x60] sm:$0xff] %v3045
        %3072 = vst [vmem:[%s535 + $0x68] sm:$0xff] %v3048
        %3073 = vst [vmem:[%s535 + $0x70] sm:$0xff] %v3053
        %3074 = vst [vmem:[%s535 + $0x78] sm:$0xff] %v3056
        %s3075 = sand.u32 %s280, 1
        %s3076 = scalar_lea.sflag [#allocation4], %s3075
        %s3077 = sand.u32 %s280, 1
        %s3078 = smul.addr %s3077, 128
        %s3079 = scalar_lea.vmem [#allocation14], %s3078
        %s3080 = sand.u32 %s306, 1
        %s3081 = scalar_lea.sflag [#allocation16], %s3080
        %s3082 = sand.u32 %s306, 1
        %s3083 = smul.addr %s3082, 128
        %s3084 = scalar_lea.vmem [#allocation15], %s3083
        // Predicated region
        $region93: #{image_embedding_forward.1} parent=63 // pred_check
          %p3085 = pneg %p290
        $region94: #{image_embedding_forward.1} parent=63 // pred_check_branch
          %3087 = sbr.rel (%p3085) target = $region96
        $region95: #{image_embedding_forward.1} parent=63 // pred_region
          %s3088 = smul.u32 16, %s36
          %s3089 = ssub.s32 25, %s3088
          %p3090 = scmp.lt.s32.totalorder %s3089, 16
          %s3091 = scalar_select %p3090, %s3089, 16
          %s3092 = smul.u32 128, %s3091
          %s3094 = ssub.s32 2048, %s3092
          %3095 = vsyncadd %s3076, %s3094
          %p3096 = scmp.ne.s32.totalorder 0, %s3092
          %s3097 = smul.addr %s3088, 128
          %s3098 = scalar_lea.hbm %s11, %s3097
          %s3099 = smul.u32 8, %s3091
          %s3100 = sshll.u32 %s3079, 4
          %s3101 = int_to_ptr.vmem [resolvable:$true] %s3100
          %s3102 = sshll.u32 %s3099, 4
          %3106 = dma.vmem_to_hbm [thread:$0]  (%p3096), %s3101, %s3102, %s3098, %s3076, 128, 128, 8
        $region96: #{image_embedding_forward.1} parent=63 // pred_fallthru
          _
        // Predicated region
        $region97: #{image_embedding_forward.1} parent=63 // pred_check
          %p3107 = pneg %p316
        $region98: #{image_embedding_forward.1} parent=63 // pred_check_branch
          %3109 = sbr.rel (%p3107) target = $region100
        $region99: #{image_embedding_forward.1} parent=63 // pred_region
          %s3110 = smul.u32 16, %s36
          %s3111 = ssub.s32 25, %s3110
          %p3112 = scmp.lt.s32.totalorder %s3111, 16
          %s3113 = scalar_select %p3112, %s3111, 16
          %s3114 = smul.u32 128, %s3113
          %s3116 = ssub.s32 2048, %s3114
          %3117 = vsyncadd %s3081, %s3116
          %p3118 = scmp.ne.s32.totalorder 0, %s3114
          %s3119 = smul.addr %s3110, 128
          %s3120 = scalar_lea.hbm %s12, %s3119
          %s3121 = smul.u32 8, %s3113
          %s3122 = sshll.u32 %s3084, 4
          %s3123 = int_to_ptr.vmem [resolvable:$true] %s3122
          %s3124 = sshll.u32 %s3121, 4
          %3128 = dma.vmem_to_hbm [thread:$0]  (%p3118), %s3123, %s3124, %s3120, %s3081, 128, 128, 8
        $region100: #{image_embedding_forward.1} parent=63 // pred_fallthru
          _
      $region64: #{image_embedding_forward.1} parent=5 // pred_fallthru
        _
      %p3129 = scmp.le.s32.totalorder 2, %s31
      // Predicated region
      $region101: #{image_embedding_forward.1} parent=5 // pred_check
        %p3130 = pneg %p3129
      $region102: #{image_embedding_forward.1} parent=5 // pred_check_branch
        %3132 = sbr.rel (%p3130) target = $region104
      $region103: #{image_embedding_forward.1} parent=5 // pred_region
        %s3133 = ssub.s32 %s31, 2
        // Predicated region
        $region105: #{image_embedding_forward.1} parent=103 // pred_check
          %p3134 = pneg %p296
        $region106: #{image_embedding_forward.1} parent=103 // pred_check_branch
          %3136 = sbr.rel (%p3134) target = $region108
        $region107: #{image_embedding_forward.1} parent=103 // pred_region
          %s3137 = sand.u32 %s281, 1
          %s3138 = scalar_lea.sflag [#allocation4], %s3137
          %s3139 = sand.u32 %s281, 1
          %s3140 = smul.addr %s3139, 128
          %s3141 = scalar_lea.vmem [#allocation14], %s3140
          %3142 = dma.done %s3138, 2048
        $region108: #{image_embedding_forward.1} parent=103 // pred_fallthru
          _
        // Predicated region
        $region109: #{image_embedding_forward.1} parent=103 // pred_check
          %p3143 = pneg %p322
        $region110: #{image_embedding_forward.1} parent=103 // pred_check_branch
          %3145 = sbr.rel (%p3143) target = $region112
        $region111: #{image_embedding_forward.1} parent=103 // pred_region
          %s3146 = sand.u32 %s307, 1
          %s3147 = scalar_lea.sflag [#allocation16], %s3146
          %s3148 = sand.u32 %s307, 1
          %s3149 = smul.addr %s3148, 128
          %s3150 = scalar_lea.vmem [#allocation15], %s3149
          %3151 = dma.done %s3147, 2048
        $region112: #{image_embedding_forward.1} parent=103 // pred_fallthru
          _
      $region104: #{image_embedding_forward.1} parent=5 // pred_fallthru
        _
    $region6: #{image_embedding_forward.1} parent=1 // loop_footer
      %s35 = sadd.s32 1, %s31
    $region7: #{image_embedding_forward.1} parent=1 // loop_footer_branch
      %30 = sbr.rel target = $region3
    $region8: #{image_embedding_forward.1} parent=1 // loop_exit
      _
    %3152 = vsyncpa [#allocation3], 1
    %s3153 = scalar_lea.sflag [#allocation3], 1
    %3154 = vsyncpa %s3153, 1
    %3155 = vsyncpa [#allocation6], 1
    %3156 = vsyncpa [#allocation9], 1
    %3157 = vsyncpa [#allocation12], 1
    %3158 = vsyncpa [#allocation4], 1
    %s3159 = scalar_lea.sflag [#allocation4], 1
    %3160 = vsyncpa %s3159, 1
    %3161 = vsyncpa [#allocation16], 1
    %s3162 = scalar_lea.sflag [#allocation16], 1
    %3163 = vsyncpa %s3162, 1

</llo_original>
